<compile_context>
chip_gen: v6e
topology: v6e:2x2x1
jax: 0.10.0
libtpu: 0.0.40
codegen_flags: <defaults>
</compile_context>

<pallas_src>
import numpy as np
import jax
import jax.numpy as jnp
from jax.experimental import pallas as pl
from jax.experimental.pallas import tpu as pltpu


def _round_up(v, m):
    return ((v + m - 1) // m) * m


# ---------------------------------------------------------------------------
# Kernel: one LSTM step of the fused (batch-tile, T) grid.
# ---------------------------------------------------------------------------
def _lstm_seq_kernel(x_ref, h0_ref, c0_ref, wx_ref, wh_ref, b_ref,
                     hseq_ref, cfin_ref, h_sc, c_sc):
    """x_ref:    [tm, I]      input at step t                        (bf16)
    h0_ref:   [tm, Hp]     initial hidden state (used at t == 0)   (bf16)
    c0_ref:   [tm, Hp]     initial cell memory  (used at t == 0)   (f32)
    wx_ref:   [I,  4*Hp]   stacked gate weights for x, order (i, o, f, c_hat)
    wh_ref:   [Hp, 4*Hp]   stacked gate weights for h (rows zero-padded H->Hp)
    b_ref:    [1,  4*Hp]   stacked gate biases (f32)
    hseq_ref: [tm, Hp]     h_t output for this step                (bf16)
    cfin_ref: [tm, Hp]     final cell memory (written at t == T-1) (f32)
    h_sc, c_sc: VMEM carries of h (bf16) / c (f32) across the T axis.
    """
    t = pl.program_id(1)

    @pl.when(t == 0)
    def _():
        h_sc[...] = h0_ref[...]
        c_sc[...] = c0_ref[...]

    Hp = h_sc.shape[1]

    # Two MXU matmuls (x part + h part) covering all four gates, f32 accumulate.
    z = (jnp.dot(x_ref[...], wx_ref[...], preferred_element_type=jnp.float32)
         + jnp.dot(h_sc[...], wh_ref[...], preferred_element_type=jnp.float32)
         + b_ref[...])

    def _sigmoid(v):
        # sigmoid(v) = 0.5 * tanh(0.5 * v) + 0.5 : one EUP op per element.
        return 0.5 * jnp.tanh(0.5 * v) + 0.5

    # Gate slices fall on 128-lane boundaries (Hp is a multiple of 128).
    i_t = _sigmoid(z[:, 0 * Hp:1 * Hp])
    o_t = _sigmoid(z[:, 1 * Hp:2 * Hp])
    f_t = _sigmoid(z[:, 2 * Hp:3 * Hp])
    g_t = jnp.tanh(z[:, 3 * Hp:4 * Hp])

    c_t = f_t * c_sc[...] + i_t * g_t
    h_t = o_t * jnp.tanh(c_t)

    c_sc[...] = c_t
    h_bf = h_t.astype(jnp.bfloat16)
    h_sc[...] = h_bf
    hseq_ref[...] = h_bf

    @pl.when(t == pl.num_programs(1) - 1)
    def _():
        cfin_ref[...] = c_t


# ---------------------------------------------------------------------------
# Parameter preparation (one-time stacking / padding / casting).
# ---------------------------------------------------------------------------
def prepare_params(params, compute_dtype=jnp.bfloat16):
    K, H = params["weight_i"].shape          # K = H + I
    I = K - H
    Hp = _round_up(H, 128)

    def pad_cols(a):                          # [*, H] -> [*, Hp]
        return jnp.pad(a, ((0, 0), (0, Hp - H)))

    # Gate order (i, o, f, c_hat); each gate block padded to Hp columns.
    w4 = jnp.concatenate(
        [pad_cols(params["weight_i"]), pad_cols(params["weight_o"]),
         pad_cols(params["weight_f"]), pad_cols(params["weight"])], axis=1)
    b4 = jnp.concatenate(
        [pad_cols(params["bias_i"]), pad_cols(params["bias_o"]),
         pad_cols(params["bias_f"]), pad_cols(params["bias"])], axis=1)

    wx = w4[:I]                                             # rows multiplying x
    wh = jnp.pad(w4[I:], ((0, Hp - H), (0, 0)))             # rows for h, padded to Hp
    return {
        "wx": wx.astype(compute_dtype),
        "wh": wh.astype(compute_dtype),
        "b4": b4.astype(jnp.float32),
        "H": H, "I": I, "Hp": Hp,
    }


# ---------------------------------------------------------------------------
# VMEM accounting & batch tiling.
# ---------------------------------------------------------------------------
def _vmem_capacity_bytes():
    try:
        return int(pltpu.get_tpu_info().vmem_capacity_bytes)
    except Exception:
        return 128 << 20


def _weight_bytes(I, Hp, buffers):
    return buffers * ((I + Hp) * 4 * Hp * 2 + 4 * Hp * 4)


def _activation_row_bytes(I, Hp):
    # Per-batch-row VMEM: double-buffered x tile (bf16), h0 (bf16) + c0 (f32),
    # double-buffered h_seq output (bf16), c_final (f32), h/c scratch carries,
    # plus rough f32 temporaries for z and the gates.
    return (2 * I * 2 + Hp * 2 + Hp * 4
            + 2 * Hp * 2 + Hp * 4
            + Hp * 2 + Hp * 4
            + 2 * 4 * Hp * 4)


def _pick_batch_tiling(B, I, Hp, single_buffer_weights):
    """Pick (padded batch, batch tile). Always >= 2 tiles, tile multiple of 16."""
    cap = int(0.85 * _vmem_capacity_bytes())
    act_budget = max(cap - _weight_bytes(I, Hp, 1 if single_buffer_weights else 2),
                     1 << 20)
    row_bytes = _activation_row_bytes(I, Hp)
    half = max(16, _round_up(-(-B // 2), 16))     # ceil(B/2), at least 16
    tm = 16
    for cand in (16, 32, 64, 128, 256, 512):
        if cand <= half and cand * row_bytes <= act_budget:
            tm = cand
    Bp = max(_round_up(B, tm), 2 * tm)
    return Bp, tm


def _vmem_limit_bytes(tm, I, Hp, single_buffer_weights):
    need = (_weight_bytes(I, Hp, 1 if single_buffer_weights else 2)
            + tm * _activation_row_bytes(I, Hp) + (2 << 20))
    cap = int(0.85 * _vmem_capacity_bytes())
    return int(min(max(need, 4 << 20), cap))


# ---------------------------------------------------------------------------
# Wrappers.
# ---------------------------------------------------------------------------
def lstm_sequence_forward(x_seq, hidden_state, prepared,
                          single_buffer_weights=True):
    """Run T LSTM-cell steps in ONE pallas_call.

    x_seq:        [T, B, input_size]
    hidden_state: [B, 2*H]  (first half h, second half c), as in the module.
    Returns (h_seq [T, B, H] f32, hidden_state_T [B, 2*H] f32); each step has
    exactly the module's forward semantics.
    """
    T, B, I = x_seq.shape
    H, Hp = prepared["H"], prepared["Hp"]
    assert I == prepared["I"], "input_size mismatch with prepared params"

    Bp, tm = _pick_batch_tiling(B, I, Hp, single_buffer_weights)

    x_b = x_seq.astype(jnp.bfloat16)
    h0 = hidden_state[:, :H].astype(jnp.bfloat16)
    c0 = hidden_state[:, H:].astype(jnp.float32)
    if Bp != B:
        x_b = jnp.pad(x_b, ((0, 0), (0, Bp - B), (0, 0)))
        h0 = jnp.pad(h0, ((0, Bp - B), (0, 0)))
        c0 = jnp.pad(c0, ((0, Bp - B), (0, 0)))
    if Hp != H:
        h0 = jnp.pad(h0, ((0, 0), (0, Hp - H)))
        c0 = jnp.pad(c0, ((0, 0), (0, Hp - H)))

    grid = (Bp // tm, T)

    def _weight_spec(shape, single_buf):
        idx = lambda m, t: (0, 0)
        if single_buf:
            return pl.BlockSpec(shape, idx, pipeline_mode=pl.Buffered(1))
        return pl.BlockSpec(shape, idx)

    def _call(single_buf):
        return pl.pallas_call(
            _lstm_seq_kernel,
            out_shape=(jax.ShapeDtypeStruct((T, Bp, Hp), jnp.bfloat16),
                       jax.ShapeDtypeStruct((Bp, Hp), jnp.float32)),
            grid=grid,
            in_specs=[
                pl.BlockSpec((None, tm, I), lambda m, t: (t, m, 0)),   # x_t tile
                pl.BlockSpec((tm, Hp), lambda m, t: (m, 0)),           # h0 tile
                pl.BlockSpec((tm, Hp), lambda m, t: (m, 0)),           # c0 tile
                _weight_spec((I, 4 * Hp), single_buf),                 # Wx (resident)
                _weight_spec((Hp, 4 * Hp), single_buf),                # Wh (resident)
                _weight_spec((1, 4 * Hp), single_buf),                 # bias (resident)
            ],
            out_specs=(pl.BlockSpec((None, tm, Hp), lambda m, t: (t, m, 0)),
                       pl.BlockSpec((tm, Hp), lambda m, t: (m, 0))),
            scratch_shapes=[pltpu.VMEM((tm, Hp), jnp.bfloat16),        # h carry
                            pltpu.VMEM((tm, Hp), jnp.float32)],        # c carry
            compiler_params=pltpu.CompilerParams(
                dimension_semantics=("parallel", "arbitrary"),
                vmem_limit_bytes=_vmem_limit_bytes(tm, I, Hp, single_buf)),
        )(x_b, h0, c0, prepared["wx"], prepared["wh"], prepared["b4"])

    if single_buffer_weights:
        try:
            h_seq_p, c_fin_p = _call(True)
        except Exception:   # pipeline_mode / Buffered(1) unsupported: fall back
            h_seq_p, c_fin_p = _call(False)
    else:
        h_seq_p, c_fin_p = _call(False)

    # Strip batch / gate padding; present the module's interface only at the
    # sequence boundary (internal state stays padded the whole sequence).
    h_seq = h_seq_p[:, :B, :H].astype(jnp.float32)
    hidden_T = jnp.concatenate([h_seq[-1], c_fin_p[:B, :H]], axis=1)
    return h_seq, hidden_T


def lstm_cell_forward(x, hidden_state, prepared):
    """Single-step forward matching LSTMCell.forward: returns [B, 2*H]."""
    _, hidden_next = lstm_sequence_forward(x[None], hidden_state, prepared)
    return hidden_next


# ---------------------------------------------------------------------------
# Reference / init / demo.
# ---------------------------------------------------------------------------
def init_params(key, hidden_state_size, input_size):
    keys = jax.random.split(key, 4)
    scale = 1.0 / np.sqrt(hidden_state_size + input_size)
    shape_w = (hidden_state_size + input_size, hidden_state_size)
    return {
        "weight_f": jax.random.normal(keys[0], shape_w, jnp.float32) * scale,
        "bias_f": jnp.zeros((1, hidden_state_size), jnp.float32),
        "weight_i": jax.random.normal(keys[1], shape_w, jnp.float32) * scale,
        "bias_i": jnp.zeros((1, hidden_state_size), jnp.float32),
        "weight_o": jax.random.normal(keys[2], shape_w, jnp.float32) * scale,
        "bias_o": jnp.zeros((1, hidden_state_size), jnp.float32),
        "weight": jax.random.normal(keys[3], shape_w, jnp.float32) * scale,
        "bias": jnp.zeros((1, hidden_state_size), jnp.float32),
    }


def lstm_cell_reference(x, hidden_state, params, matmul_dtype=jnp.float32):
    """Pure-JAX reference mirroring the PyTorch forward, for verification."""
    H = hidden_state.shape[1] // 2
    h_prev = hidden_state[:, :H]
    c_prev = hidden_state[:, H:]
    ih = jnp.concatenate([x, h_prev], axis=1).astype(matmul_dtype)

    def gate(w, b):
        return jnp.dot(ih, w.astype(matmul_dtype),
                       preferred_element_type=jnp.float32) + b

    i_t = jax.nn.sigmoid(gate(params["weight_i"], params["bias_i"]))
    o_t = jax.nn.sigmoid(gate(params["weight_o"], params["bias_o"]))
    f_t = jax.nn.sigmoid(gate(params["weight_f"], params["bias_f"]))
    c_hat_t = jnp.tanh(gate(params["weight"], params["bias"]))
    c_t = f_t * c_prev + i_t * c_hat_t
    h_t = o_t * jnp.tanh(c_t)
    return jnp.concatenate([h_t, c_t], axis=1)


if __name__ == "__main__":
    B, HIDDEN, INPUT, T = 2, 32, 32, 8

    key = jax.random.PRNGKey(0)
    k_params, k_x, k_h = jax.random.split(key, 3)

    params = init_params(k_params, HIDDEN, INPUT)
    prepared = prepare_params(params)

    x_seq = jax.random.normal(k_x, (T, B, INPUT), jnp.float32)
    hidden0 = jax.random.normal(k_h, (B, 2 * HIDDEN), jnp.float32)

    # --- single step: exact module-forward interface ------------------------
    out1 = lstm_cell_forward(x_seq[0], hidden0, prepared)
    out1 = jax.block_until_ready(out1)

    ref1_bf16 = lstm_cell_reference(x_seq[0], hidden0, params,
                                    matmul_dtype=jnp.bfloat16)
    np.testing.assert_allclose(np.asarray(out1), np.asarray(ref1_bf16),
                               rtol=1e-2, atol=1e-2)
    ref1_f32 = lstm_cell_reference(x_seq[0], hidden0, params,
                                   matmul_dtype=jnp.float32)
    np.testing.assert_allclose(np.asarray(out1), np.asarray(ref1_f32),
                               rtol=5e-2, atol=5e-2)

    # --- T steps fused into one pallas_call ---------------------------------
    h_seq, hidden_T = lstm_sequence_forward(x_seq, hidden0, prepared)
    hidden_T = jax.block_until_ready(hidden_T)

    ref_state = hidden0
    ref_h_seq = []
    for t in range(T):
        ref_state = lstm_cell_reference(x_seq[t], ref_state, params,
                                        matmul_dtype=jnp.bfloat16)
        ref_h_seq.append(ref_state[:, :HIDDEN])
    np.testing.assert_allclose(np.asarray(hidden_T), np.asarray(ref_state),
                               rtol=2e-2, atol=2e-2)
    np.testing.assert_allclose(np.asarray(h_seq),
                               np.asarray(jnp.stack(ref_h_seq)),
                               rtol=2e-2, atol=2e-2)

    print("KERNEL_OK")
</pallas_src>

<mosaic_0001>
module attributes {stable_mosaic.version = 11 : i64} {
  func.func @_lstm_seq_kernel(%arg0: i32, %arg1: i32, %arg2: memref<1x16x32xbf16, #tpu.memory_space<vmem>>, %arg3: memref<16x128xbf16, #tpu.memory_space<vmem>>, %arg4: memref<16x128xf32, #tpu.memory_space<vmem>>, %arg5: memref<32x512xbf16, #tpu.memory_space<vmem>>, %arg6: memref<128x512xbf16, #tpu.memory_space<vmem>>, %arg7: memref<1x512xf32, #tpu.memory_space<vmem>>, %arg8: memref<1x16x128xbf16, #tpu.memory_space<vmem>>, %arg9: memref<16x128xf32, #tpu.memory_space<vmem>>, %arg10: memref<16x128xbf16, #tpu.memory_space<vmem>>, %arg11: memref<16x128xf32, #tpu.memory_space<vmem>>) attributes {dimension_semantics = [#tpu.dimension_semantics<parallel>, #tpu.dimension_semantics<arbitrary>], iteration_bounds = array<i64: 2, 1>, scalar_prefetch = 0 : i64, scratch_operands = 2 : i64, tpu.core_type = #tpu.core_type<tc>, window_params = [{transform_indices = @transform_0, window_bounds = array<i64: 1, 16, 32>}, {transform_indices = @transform_1, window_bounds = array<i64: 16, 128>}, {transform_indices = @transform_2, window_bounds = array<i64: 16, 128>}, {pipeline_mode = #tpu.pipeline_mode<synchronous>, transform_indices = @transform_3, window_bounds = array<i64: 32, 512>}, {pipeline_mode = #tpu.pipeline_mode<synchronous>, transform_indices = @transform_4, window_bounds = array<i64: 128, 512>}, {pipeline_mode = #tpu.pipeline_mode<synchronous>, transform_indices = @transform_5, window_bounds = array<i64: 1, 512>}, {transform_indices = @transform_6, window_bounds = array<i64: 1, 16, 128>}, {transform_indices = @transform_7, window_bounds = array<i64: 16, 128>}]} {
    %c0_i32 = arith.constant 0 : i32
    %0 = arith.cmpi eq, %arg1, %c0_i32 : i32
    %1 = arith.extui %0 : i1 to i32
    %c0_i32_0 = arith.constant 0 : i32
    %2 = arith.cmpi ne, %1, %c0_i32_0 : i32
    scf.if %2 {
      %c0_32 = arith.constant 0 : index
      %c0_33 = arith.constant 0 : index
      %55 = vector.load %arg3[%c0_32, %c0_33] : memref<16x128xbf16, #tpu.memory_space<vmem>>, vector<16x128xbf16>
      %c0_34 = arith.constant 0 : index
      %c0_35 = arith.constant 0 : index
      %56 = vector.load %arg10[%c0_34, %c0_35] : memref<16x128xbf16, #tpu.memory_space<vmem>>, vector<16x128xbf16>
      tpu.vector_store %arg10[%c0_34, %c0_35], %55 {strides = array<i32>} : memref<16x128xbf16, #tpu.memory_space<vmem>>, vector<16x128xbf16>,
      %c0_36 = arith.constant 0 : index
      %c0_37 = arith.constant 0 : index
      %57 = vector.load %arg4[%c0_36, %c0_37] : memref<16x128xf32, #tpu.memory_space<vmem>>, vector<16x128xf32>
      %c0_38 = arith.constant 0 : index
      %c0_39 = arith.constant 0 : index
      %58 = vector.load %arg11[%c0_38, %c0_39] : memref<16x128xf32, #tpu.memory_space<vmem>>, vector<16x128xf32>
      tpu.vector_store %arg11[%c0_38, %c0_39], %57 {strides = array<i32>} : memref<16x128xf32, #tpu.memory_space<vmem>>, vector<16x128xf32>,
    } else {
    }
    %c0 = arith.constant 0 : index
    %c0_1 = arith.constant 0 : index
    %c0_2 = arith.constant 0 : index
    %3 = vector.load %arg2[%c0, %c0_1, %c0_2] : memref<1x16x32xbf16, #tpu.memory_space<vmem>>, vector<1x16x32xbf16>
    %4 = vector.shape_cast %3 : vector<1x16x32xbf16> to vector<16x32xbf16>
    %c0_3 = arith.constant 0 : index
    %c0_4 = arith.constant 0 : index
    %5 = vector.load %arg5[%c0_3, %c0_4] : memref<32x512xbf16, #tpu.memory_space<vmem>>, vector<32x512xbf16>
    %cst = arith.constant dense<0.000000e+00> : vector<16x512xf32>
    %6 = tpu.matmul %4, %5, %cst {dimension_numbers = #tpu.dot_dimension_numbers<[1], [0], [0], [1], [0, 0, 1, 1], [], []>} : vector<16x32xbf16>, vector<32x512xbf16>, vector<16x512xf32> -> vector<16x512xf32>
    %c0_5 = arith.constant 0 : index
    %c0_6 = arith.constant 0 : index
    %7 = vector.load %arg10[%c0_5, %c0_6] : memref<16x128xbf16, #tpu.memory_space<vmem>>, vector<16x128xbf16>
    %c0_7 = arith.constant 0 : index
    %c0_8 = arith.constant 0 : index
    %8 = vector.load %arg6[%c0_7, %c0_8] : memref<128x512xbf16, #tpu.memory_space<vmem>>, vector<128x512xbf16>
    %cst_9 = arith.constant dense<0.000000e+00> : vector<16x512xf32>
    %9 = tpu.matmul %7, %8, %cst_9 {dimension_numbers = #tpu.dot_dimension_numbers<[1], [0], [0], [1], [0, 0, 1, 1], [], []>} : vector<16x128xbf16>, vector<128x512xbf16>, vector<16x512xf32> -> vector<16x512xf32>
    %10 = arith.addf %6, %9 : vector<16x512xf32>
    %c0_10 = arith.constant 0 : index
    %c0_11 = arith.constant 0 : index
    %11 = vector.load %arg7[%c0_10, %c0_11] : memref<1x512xf32, #tpu.memory_space<vmem>>, vector<1x512xf32>
    %12 = vector.broadcast %11 : vector<1x512xf32> to vector<16x512xf32>
    %13 = arith.addf %10, %12 : vector<16x512xf32>
    %14 = vector.extract_strided_slice %13 {offsets = [0, 0], sizes = [16, 128], strides = [1, 1]} : vector<16x512xf32> to vector<16x128xf32>
    %cst_12 = arith.constant 5.000000e-01 : f32
    %15 = vector.broadcast %cst_12 : f32 to vector<16x128xf32>
    %16 = arith.mulf %15, %14 : vector<16x128xf32>
    %17 = math.tanh %16 : vector<16x128xf32>
    %cst_13 = arith.constant 5.000000e-01 : f32
    %18 = vector.broadcast %cst_13 : f32 to vector<16x128xf32>
    %19 = arith.mulf %18, %17 : vector<16x128xf32>
    %cst_14 = arith.constant 5.000000e-01 : f32
    %20 = vector.broadcast %cst_14 : f32 to vector<16x128xf32>
    %21 = arith.addf %19, %20 : vector<16x128xf32>
    %22 = vector.extract_strided_slice %13 {offsets = [0, 128], sizes = [16, 128], strides = [1, 1]} : vector<16x512xf32> to vector<16x128xf32>
    %cst_15 = arith.constant 5.000000e-01 : f32
    %23 = vector.broadcast %cst_15 : f32 to vector<16x128xf32>
    %24 = arith.mulf %23, %22 : vector<16x128xf32>
    %25 = math.tanh %24 : vector<16x128xf32>
    %cst_16 = arith.constant 5.000000e-01 : f32
    %26 = vector.broadcast %cst_16 : f32 to vector<16x128xf32>
    %27 = arith.mulf %26, %25 : vector<16x128xf32>
    %cst_17 = arith.constant 5.000000e-01 : f32
    %28 = vector.broadcast %cst_17 : f32 to vector<16x128xf32>
    %29 = arith.addf %27, %28 : vector<16x128xf32>
    %30 = vector.extract_strided_slice %13 {offsets = [0, 256], sizes = [16, 128], strides = [1, 1]} : vector<16x512xf32> to vector<16x128xf32>
    %cst_18 = arith.constant 5.000000e-01 : f32
    %31 = vector.broadcast %cst_18 : f32 to vector<16x128xf32>
    %32 = arith.mulf %31, %30 : vector<16x128xf32>
    %33 = math.tanh %32 : vector<16x128xf32>
    %cst_19 = arith.constant 5.000000e-01 : f32
    %34 = vector.broadcast %cst_19 : f32 to vector<16x128xf32>
    %35 = arith.mulf %34, %33 : vector<16x128xf32>
    %cst_20 = arith.constant 5.000000e-01 : f32
    %36 = vector.broadcast %cst_20 : f32 to vector<16x128xf32>
    %37 = arith.addf %35, %36 : vector<16x128xf32>
    %38 = vector.extract_strided_slice %13 {offsets = [0, 384], sizes = [16, 128], strides = [1, 1]} : vector<16x512xf32> to vector<16x128xf32>
    %39 = math.tanh %38 : vector<16x128xf32>
    %c0_21 = arith.constant 0 : index
    %c0_22 = arith.constant 0 : index
    %40 = vector.load %arg11[%c0_21, %c0_22] : memref<16x128xf32, #tpu.memory_space<vmem>>, vector<16x128xf32>
    %41 = arith.mulf %37, %40 : vector<16x128xf32>
    %42 = arith.mulf %21, %39 : vector<16x128xf32>
    %43 = arith.addf %41, %42 : vector<16x128xf32>
    %44 = math.tanh %43 : vector<16x128xf32>
    %45 = arith.mulf %29, %44 : vector<16x128xf32>
    %c0_23 = arith.constant 0 : index
    %c0_24 = arith.constant 0 : index
    %46 = vector.load %arg11[%c0_23, %c0_24] : memref<16x128xf32, #tpu.memory_space<vmem>>, vector<16x128xf32>
    tpu.vector_store %arg11[%c0_23, %c0_24], %43 {strides = array<i32>} : memref<16x128xf32, #tpu.memory_space<vmem>>, vector<16x128xf32>,
    %47 = arith.truncf %45 : vector<16x128xf32> to vector<16x128xbf16>
    %c0_25 = arith.constant 0 : index
    %c0_26 = arith.constant 0 : index
    %48 = vector.load %arg10[%c0_25, %c0_26] : memref<16x128xbf16, #tpu.memory_space<vmem>>, vector<16x128xbf16>
    tpu.vector_store %arg10[%c0_25, %c0_26], %47 {strides = array<i32>} : memref<16x128xbf16, #tpu.memory_space<vmem>>, vector<16x128xbf16>,
    %c0_27 = arith.constant 0 : index
    %c0_28 = arith.constant 0 : index
    %c0_29 = arith.constant 0 : index
    %49 = vector.load %arg8[%c0_27, %c0_28, %c0_29] : memref<1x16x128xbf16, #tpu.memory_space<vmem>>, vector<1x16x128xbf16>
    %50 = vector.shape_cast %49 : vector<1x16x128xbf16> to vector<16x128xbf16>
    %51 = vector.shape_cast %47 : vector<16x128xbf16> to vector<1x16x128xbf16>
    tpu.vector_store %arg8[%c0_27, %c0_28, %c0_29], %51 {strides = array<i32>} : memref<1x16x128xbf16, #tpu.memory_space<vmem>>, vector<1x16x128xbf16>,
    %c0_i32_30 = arith.constant 0 : i32
    %52 = arith.cmpi eq, %arg1, %c0_i32_30 : i32
    %53 = arith.extui %52 : i1 to i32
    %c0_i32_31 = arith.constant 0 : i32
    %54 = arith.cmpi ne, %53, %c0_i32_31 : i32
    scf.if %54 {
      %c0_32 = arith.constant 0 : index
      %c0_33 = arith.constant 0 : index
      %55 = vector.load %arg9[%c0_32, %c0_33] : memref<16x128xf32, #tpu.memory_space<vmem>>, vector<16x128xf32>
      tpu.vector_store %arg9[%c0_32, %c0_33], %43 {strides = array<i32>} : memref<16x128xf32, #tpu.memory_space<vmem>>, vector<16x128xf32>,
    } else {
    }
    return
  }
  func.func @transform_0(%arg0: i32, %arg1: i32) -> (i32, i32, i32) {
    %c0_i32 = arith.constant 0 : i32
    %c0_i32_0 = arith.constant 0 : i32
    return %arg1, %arg0, %c0_i32 : i32, i32, i32
  }
  func.func @transform_1(%arg0: i32, %arg1: i32) -> (i32, i32) {
    %c0_i32 = arith.constant 0 : i32
    %c0_i32_0 = arith.constant 0 : i32
    return %arg0, %c0_i32 : i32, i32
  }
  func.func @transform_2(%arg0: i32, %arg1: i32) -> (i32, i32) {
    %c0_i32 = arith.constant 0 : i32
    %c0_i32_0 = arith.constant 0 : i32
    return %arg0, %c0_i32 : i32, i32
  }
  func.func @transform_3(%arg0: i32, %arg1: i32) -> (i32, i32) {
    %c0_i32 = arith.constant 0 : i32
    %c0_i32_0 = arith.constant 0 : i32
    %c0_i32_1 = arith.constant 0 : i32
    return %c0_i32, %c0_i32_0 : i32, i32
  }
  func.func @transform_4(%arg0: i32, %arg1: i32) -> (i32, i32) {
    %c0_i32 = arith.constant 0 : i32
    %c0_i32_0 = arith.constant 0 : i32
    %c0_i32_1 = arith.constant 0 : i32
    return %c0_i32, %c0_i32_0 : i32, i32
  }
  func.func @transform_5(%arg0: i32, %arg1: i32) -> (i32, i32) {
    %c0_i32 = arith.constant 0 : i32
    %c0_i32_0 = arith.constant 0 : i32
    %c0_i32_1 = arith.constant 0 : i32
    return %c0_i32, %c0_i32_0 : i32, i32
  }
  func.func @transform_6(%arg0: i32, %arg1: i32) -> (i32, i32, i32) {
    %c0_i32 = arith.constant 0 : i32
    %c0_i32_0 = arith.constant 0 : i32
    return %arg1, %arg0, %c0_i32 : i32, i32, i32
  }
  func.func @transform_7(%arg0: i32, %arg1: i32) -> (i32, i32) {
    %c0_i32 = arith.constant 0 : i32
    %c0_i32_0 = arith.constant 0 : i32
    return %arg0, %c0_i32 : i32, i32
  }
}

module attributes {stable_mosaic.version = 11 : i64} {
  func.func @_lstm_seq_kernel(%arg0: i32, %arg1: i32, %arg2: memref<1x16x32xbf16, #tpu.memory_space<vmem>>, %arg3: memref<16x128xbf16, #tpu.memory_space<vmem>>, %arg4: memref<16x128xf32, #tpu.memory_space<vmem>>, %arg5: memref<32x512xbf16, #tpu.memory_space<vmem>>, %arg6: memref<128x512xbf16, #tpu.memory_space<vmem>>, %arg7: memref<1x512xf32, #tpu.memory_space<vmem>>, %arg8: memref<1x16x128xbf16, #tpu.memory_space<vmem>>, %arg9: memref<16x128xf32, #tpu.memory_space<vmem>>, %arg10: memref<16x128xbf16, #tpu.memory_space<vmem>>, %arg11: memref<16x128xf32, #tpu.memory_space<vmem>>) attributes {dimension_semantics = [#tpu.dimension_semantics<parallel>, #tpu.dimension_semantics<arbitrary>], iteration_bounds = array<i64: 2, 1>, scalar_prefetch = 0 : i64, scratch_operands = 2 : i64, tpu.core_type = #tpu.core_type<tc>, window_params = [{transform_indices = @transform_0, window_bounds = array<i64: 1, 16, 32>}, {transform_indices = @transform_1, window_bounds = array<i64: 16, 128>}, {transform_indices = @transform_2, window_bounds = array<i64: 16, 128>}, {pipeline_mode = #tpu.pipeline_mode<synchronous>, transform_indices = @transform_3, window_bounds = array<i64: 32, 512>}, {pipeline_mode = #tpu.pipeline_mode<synchronous>, transform_indices = @transform_4, window_bounds = array<i64: 128, 512>}, {pipeline_mode = #tpu.pipeline_mode<synchronous>, transform_indices = @transform_5, window_bounds = array<i64: 1, 512>}, {transform_indices = @transform_6, window_bounds = array<i64: 1, 16, 128>}, {transform_indices = @transform_7, window_bounds = array<i64: 16, 128>}]} {
    %c0_i32 = arith.constant 0 : i32
    %0 = arith.cmpi eq, %arg1, %c0_i32 : i32
    %1 = arith.extui %0 : i1 to i32
    %c0_i32_0 = arith.constant 0 : i32
    %2 = arith.cmpi ne, %1, %c0_i32_0 : i32
    scf.if %2 {
      %c0_32 = arith.constant 0 : index
      %c0_33 = arith.constant 0 : index
      %55 = vector.load %arg3[%c0_32, %c0_33] : memref<16x128xbf16, #tpu.memory_space<vmem>>, vector<16x128xbf16>
      %c0_34 = arith.constant 0 : index
      %c0_35 = arith.constant 0 : index
      %56 = vector.load %arg10[%c0_34, %c0_35] : memref<16x128xbf16, #tpu.memory_space<vmem>>, vector<16x128xbf16>
      tpu.vector_store %arg10[%c0_34, %c0_35], %55 {strides = array<i32>} : memref<16x128xbf16, #tpu.memory_space<vmem>>, vector<16x128xbf16>,
      %c0_36 = arith.constant 0 : index
      %c0_37 = arith.constant 0 : index
      %57 = vector.load %arg4[%c0_36, %c0_37] : memref<16x128xf32, #tpu.memory_space<vmem>>, vector<16x128xf32>
      %c0_38 = arith.constant 0 : index
      %c0_39 = arith.constant 0 : index
      %58 = vector.load %arg11[%c0_38, %c0_39] : memref<16x128xf32, #tpu.memory_space<vmem>>, vector<16x128xf32>
      tpu.vector_store %arg11[%c0_38, %c0_39], %57 {strides = array<i32>} : memref<16x128xf32, #tpu.memory_space<vmem>>, vector<16x128xf32>,
    } else {
    }
    %c0 = arith.constant 0 : index
    %c0_1 = arith.constant 0 : index
    %c0_2 = arith.constant 0 : index
    %3 = vector.load %arg2[%c0, %c0_1, %c0_2] : memref<1x16x32xbf16, #tpu.memory_space<vmem>>, vector<1x16x32xbf16>
    %4 = vector.shape_cast %3 : vector<1x16x32xbf16> to vector<16x32xbf16>
    %c0_3 = arith.constant 0 : index
    %c0_4 = arith.constant 0 : index
    %5 = vector.load %arg5[%c0_3, %c0_4] : memref<32x512xbf16, #tpu.memory_space<vmem>>, vector<32x512xbf16>
    %cst = arith.constant dense<0.000000e+00> : vector<16x512xf32>
    %6 = tpu.matmul %4, %5, %cst {dimension_numbers = #tpu.dot_dimension_numbers<[1], [0], [0], [1], [0, 0, 1, 1], [], []>} : vector<16x32xbf16>, vector<32x512xbf16>, vector<16x512xf32> -> vector<16x512xf32>
    %c0_5 = arith.constant 0 : index
    %c0_6 = arith.constant 0 : index
    %7 = vector.load %arg10[%c0_5, %c0_6] : memref<16x128xbf16, #tpu.memory_space<vmem>>, vector<16x128xbf16>
    %c0_7 = arith.constant 0 : index
    %c0_8 = arith.constant 0 : index
    %8 = vector.load %arg6[%c0_7, %c0_8] : memref<128x512xbf16, #tpu.memory_space<vmem>>, vector<128x512xbf16>
    %cst_9 = arith.constant dense<0.000000e+00> : vector<16x512xf32>
    %9 = tpu.matmul %7, %8, %cst_9 {dimension_numbers = #tpu.dot_dimension_numbers<[1], [0], [0], [1], [0, 0, 1, 1], [], []>} : vector<16x128xbf16>, vector<128x512xbf16>, vector<16x512xf32> -> vector<16x512xf32>
    %10 = arith.addf %6, %9 : vector<16x512xf32>
    %c0_10 = arith.constant 0 : index
    %c0_11 = arith.constant 0 : index
    %11 = vector.load %arg7[%c0_10, %c0_11] : memref<1x512xf32, #tpu.memory_space<vmem>>, vector<1x512xf32>
    %12 = vector.broadcast %11 : vector<1x512xf32> to vector<16x512xf32>
    %13 = arith.addf %10, %12 : vector<16x512xf32>
    %14 = vector.extract_strided_slice %13 {offsets = [0, 0], sizes = [16, 128], strides = [1, 1]} : vector<16x512xf32> to vector<16x128xf32>
    %cst_12 = arith.constant 5.000000e-01 : f32
    %15 = vector.broadcast %cst_12 : f32 to vector<16x128xf32>
    %16 = arith.mulf %15, %14 : vector<16x128xf32>
    %17 = math.tanh %16 : vector<16x128xf32>
    %cst_13 = arith.constant 5.000000e-01 : f32
    %18 = vector.broadcast %cst_13 : f32 to vector<16x128xf32>
    %19 = arith.mulf %18, %17 : vector<16x128xf32>
    %cst_14 = arith.constant 5.000000e-01 : f32
    %20 = vector.broadcast %cst_14 : f32 to vector<16x128xf32>
    %21 = arith.addf %19, %20 : vector<16x128xf32>
    %22 = vector.extract_strided_slice %13 {offsets = [0, 128], sizes = [16, 128], strides = [1, 1]} : vector<16x512xf32> to vector<16x128xf32>
    %cst_15 = arith.constant 5.000000e-01 : f32
    %23 = vector.broadcast %cst_15 : f32 to vector<16x128xf32>
    %24 = arith.mulf %23, %22 : vector<16x128xf32>
    %25 = math.tanh %24 : vector<16x128xf32>
    %cst_16 = arith.constant 5.000000e-01 : f32
    %26 = vector.broadcast %cst_16 : f32 to vector<16x128xf32>
    %27 = arith.mulf %26, %25 : vector<16x128xf32>
    %cst_17 = arith.constant 5.000000e-01 : f32
    %28 = vector.broadcast %cst_17 : f32 to vector<16x128xf32>
    %29 = arith.addf %27, %28 : vector<16x128xf32>
    %30 = vector.extract_strided_slice %13 {offsets = [0, 256], sizes = [16, 128], strides = [1, 1]} : vector<16x512xf32> to vector<16x128xf32>
    %cst_18 = arith.constant 5.000000e-01 : f32
    %31 = vector.broadcast %cst_18 : f32 to vector<16x128xf32>
    %32 = arith.mulf %31, %30 : vector<16x128xf32>
    %33 = math.tanh %32 : vector<16x128xf32>
    %cst_19 = arith.constant 5.000000e-01 : f32
    %34 = vector.broadcast %cst_19 : f32 to vector<16x128xf32>
    %35 = arith.mulf %34, %33 : vector<16x128xf32>
    %cst_20 = arith.constant 5.000000e-01 : f32
    %36 = vector.broadcast %cst_20 : f32 to vector<16x128xf32>
    %37 = arith.addf %35, %36 : vector<16x128xf32>
    %38 = vector.extract_strided_slice %13 {offsets = [0, 384], sizes = [16, 128], strides = [1, 1]} : vector<16x512xf32> to vector<16x128xf32>
    %39 = math.tanh %38 : vector<16x128xf32>
    %c0_21 = arith.constant 0 : index
    %c0_22 = arith.constant 0 : index
    %40 = vector.load %arg11[%c0_21, %c0_22] : memref<16x128xf32, #tpu.memory_space<vmem>>, vector<16x128xf32>
    %41 = arith.mulf %37, %40 : vector<16x128xf32>
    %42 = arith.mulf %21, %39 : vector<16x128xf32>
    %43 = arith.addf %41, %42 : vector<16x128xf32>
    %44 = math.tanh %43 : vector<16x128xf32>
    %45 = arith.mulf %29, %44 : vector<16x128xf32>
    %c0_23 = arith.constant 0 : index
    %c0_24 = arith.constant 0 : index
    %46 = vector.load %arg11[%c0_23, %c0_24] : memref<16x128xf32, #tpu.memory_space<vmem>>, vector<16x128xf32>
    tpu.vector_store %arg11[%c0_23, %c0_24], %43 {strides = array<i32>} : memref<16x128xf32, #tpu.memory_space<vmem>>, vector<16x128xf32>,
    %47 = arith.truncf %45 : vector<16x128xf32> to vector<16x128xbf16>
    %c0_25 = arith.constant 0 : index
    %c0_26 = arith.constant 0 : index
    %48 = vector.load %arg10[%c0_25, %c0_26] : memref<16x128xbf16, #tpu.memory_space<vmem>>, vector<16x128xbf16>
    tpu.vector_store %arg10[%c0_25, %c0_26], %47 {strides = array<i32>} : memref<16x128xbf16, #tpu.memory_space<vmem>>, vector<16x128xbf16>,
    %c0_27 = arith.constant 0 : index
    %c0_28 = arith.constant 0 : index
    %c0_29 = arith.constant 0 : index
    %49 = vector.load %arg8[%c0_27, %c0_28, %c0_29] : memref<1x16x128xbf16, #tpu.memory_space<vmem>>, vector<1x16x128xbf16>
    %50 = vector.shape_cast %49 : vector<1x16x128xbf16> to vector<16x128xbf16>
    %51 = vector.shape_cast %47 : vector<16x128xbf16> to vector<1x16x128xbf16>
    tpu.vector_store %arg8[%c0_27, %c0_28, %c0_29], %51 {strides = array<i32>} : memref<1x16x128xbf16, #tpu.memory_space<vmem>>, vector<1x16x128xbf16>,
    %c0_i32_30 = arith.constant 0 : i32
    %52 = arith.cmpi eq, %arg1, %c0_i32_30 : i32
    %53 = arith.extui %52 : i1 to i32
    %c0_i32_31 = arith.constant 0 : i32
    %54 = arith.cmpi ne, %53, %c0_i32_31 : i32
    scf.if %54 {
      %c0_32 = arith.constant 0 : index
      %c0_33 = arith.constant 0 : index
      %55 = vector.load %arg9[%c0_32, %c0_33] : memref<16x128xf32, #tpu.memory_space<vmem>>, vector<16x128xf32>
      tpu.vector_store %arg9[%c0_32, %c0_33], %43 {strides = array<i32>} : memref<16x128xf32, #tpu.memory_space<vmem>>, vector<16x128xf32>,
    } else {
    }
    return
  }
  func.func @transform_0(%arg0: i32, %arg1: i32) -> (i32, i32, i32) {
    %c0_i32 = arith.constant 0 : i32
    %c0_i32_0 = arith.constant 0 : i32
    return %arg1, %arg0, %c0_i32 : i32, i32, i32
  }
  func.func @transform_1(%arg0: i32, %arg1: i32) -> (i32, i32) {
    %c0_i32 = arith.constant 0 : i32
    %c0_i32_0 = arith.constant 0 : i32
    return %arg0, %c0_i32 : i32, i32
  }
  func.func @transform_2(%arg0: i32, %arg1: i32) -> (i32, i32) {
    %c0_i32 = arith.constant 0 : i32
    %c0_i32_0 = arith.constant 0 : i32
    return %arg0, %c0_i32 : i32, i32
  }
  func.func @transform_3(%arg0: i32, %arg1: i32) -> (i32, i32) {
    %c0_i32 = arith.constant 0 : i32
    %c0_i32_0 = arith.constant 0 : i32
    %c0_i32_1 = arith.constant 0 : i32
    return %c0_i32, %c0_i32_0 : i32, i32
  }
  func.func @transform_4(%arg0: i32, %arg1: i32) -> (i32, i32) {
    %c0_i32 = arith.constant 0 : i32
    %c0_i32_0 = arith.constant 0 : i32
    %c0_i32_1 = arith.constant 0 : i32
    return %c0_i32, %c0_i32_0 : i32, i32
  }
  func.func @transform_5(%arg0: i32, %arg1: i32) -> (i32, i32) {
    %c0_i32 = arith.constant 0 : i32
    %c0_i32_0 = arith.constant 0 : i32
    %c0_i32_1 = arith.constant 0 : i32
    return %c0_i32, %c0_i32_0 : i32, i32
  }
  func.func @transform_6(%arg0: i32, %arg1: i32) -> (i32, i32, i32) {
    %c0_i32 = arith.constant 0 : i32
    %c0_i32_0 = arith.constant 0 : i32
    return %arg1, %arg0, %c0_i32 : i32, i32, i32
  }
  func.func @transform_7(%arg0: i32, %arg1: i32) -> (i32, i32) {
    %c0_i32 = arith.constant 0 : i32
    %c0_i32_0 = arith.constant 0 : i32
    return %arg0, %c0_i32 : i32, i32
  }
}

</mosaic_0001>

<llo_original>
// kernel: tpu_custom_call.1
$region0: #{tpu_custom_call.1}
  #allocation0 [shape = 'u32[]', space=smem, size = 0x4, offset = 0x4, fixed_abs, tag = 'smem constant byte address 0x4 - core index']
  #allocation1 [shape = 'u32[144,128]{1,0:T(1,128)}', space=vmem, size = 0x12000, scoped, tag = 'internal scratch']
  #allocation2 [shape = 'bf16[16,128]{1,0:T(8,128)(2,1)}', space=vmem, size = 0x1000, scoped, tag = 'scratch operand']
  #allocation3 [shape = 'f32[16,128]{1,0:T(8,128)}', space=vmem, size = 0x2000, scoped, tag = 'scratch operand']
  %s0 = inlined_call_operand.hbm [shape: bf16[1,32,32], index: 0, kind: input, shape index: {}]
  %s1 = inlined_call_operand.hbm [shape: bf16[32,128], index: 1, kind: input, shape index: {}]
  %s2 = inlined_call_operand.hbm [shape: f32[32,128], index: 2, kind: input, shape index: {}]
  %s3 = inlined_call_operand.hbm [shape: bf16[32,512], index: 3, kind: input, shape index: {}]
  %s4 = inlined_call_operand.hbm [shape: bf16[128,512], index: 4, kind: input, shape index: {}]
  %s5 = inlined_call_operand.vmem [shape: f32[1,512], index: 5, kind: input, shape index: {}]
  %s6 = inlined_call_operand.hbm [shape: bf16[1,32,128], index: 6, kind: output, shape index: {0}]
  %s7 = inlined_call_operand.hbm [shape: f32[32,128], index: 7, kind: output, shape index: {1}]
  %8 = xla_tuple %s6, %s7
  %s9 = sld [smem:[#allocation0]]
  $region93: #{tpu_custom_call.1} parent=0
    _
  %s11 = ssub.s32 1, %s9
  %s12 = scalar_select 0, %s11, %s9
  $region1: #{tpu_custom_call.1} parent=0
    #allocation4 [shape = 'u8[8192]{0}', space=vmem, size = 0x2000, scoped, tag = 'input window, operand 0']
    #allocation5 [shape = 's32[2]{0}', space=sflag, size = 0x8, scoped, tag = 'scoped memory for tpu_custom_call.1']
    #allocation6 [shape = 's32[2]{0}', space=sflag, size = 0x8, scoped, tag = 'scoped memory for tpu_custom_call.1']
    #allocation7 [shape = 'u8[8192]{0}', space=vmem, size = 0x2000, scoped, tag = 'input window, operand 1']
    #allocation8 [shape = 's32[2]{0}', space=sflag, size = 0x8, scoped, tag = 'scoped memory for tpu_custom_call.1']
    #allocation9 [shape = 'u8[16384]{0}', space=vmem, size = 0x4000, scoped, tag = 'input window, operand 2']
    #allocation10 [shape = 'u8[32768]{0}', space=vmem, size = 0x8000, scoped, tag = 'input window, operand 3, single buffered']
    #allocation11 [shape = 's32[1]{0}', space=sflag, size = 0x4, scoped, tag = 'scoped memory for tpu_custom_call.1']
    #allocation12 [shape = 'u8[131072]{0}', space=vmem, size = 0x20000, scoped, tag = 'input window, operand 4, single buffered']
    #allocation13 [shape = 'u8[8192]{0}', space=vmem, size = 0x2000, scoped, tag = 'output window, operand 0']
    #allocation14 [shape = 'u8[16384]{0}', space=vmem, size = 0x4000, scoped, tag = 'output window, operand 1']
    #allocation15 [shape = 's32[2]{0}', space=sflag, size = 0x8, scoped, tag = 'scoped memory for tpu_custom_call.1']
    %13 = vsyncpa [#allocation5], 0
    %s14 = scalar_lea.sflag [#allocation5], 1
    %15 = vsyncpa %s14, 0
    %16 = vsyncpa [#allocation8], 0
    %s17 = scalar_lea.sflag [#allocation8], 1
    %18 = vsyncpa %s17, 0
    %19 = vsyncpa [#allocation11], 0
    %20 = vsyncpa [#allocation6], 0
    %s21 = scalar_lea.sflag [#allocation6], 1
    %22 = vsyncpa %s21, 0
    %23 = vsyncpa [#allocation15], 0
    %s24 = scalar_lea.sflag [#allocation15], 1
    %25 = vsyncpa %s24, 0
    loop: start=0, step=1, limit=4
    $region2: #{tpu_custom_call.1} parent=1 // loop_pre_header
      _
    $region3: #{tpu_custom_call.1} parent=1 // loop_header
      %s27 = sphi 0, %s31
      %p28 = scmp.ge.s32.totalorder %s27, 4
      %s34 = sphi 0, %s46
      %s35 = sphi 0, %s42
      %s36 = sphi 0, %s34
      %s37 = sphi 0, %s35
      %s38 = sphi 0, %s36
      %s39 = sphi 0, %s37
      %s51 = sphi 0, %s53
      %s54 = sphi 0, %s51
      %s55 = sphi 0, %s54
      %s71 = sphi 0, %s55
      %s77 = sphi 0, %s79
      %s80 = sphi 0, %s77
      %s81 = sphi 0, %s80
      %s97 = sphi 0, %s81
      %s103 = sphi 0, %s105
      %s106 = sphi 0, %s103
      %s107 = sphi 0, %s106
      %s123 = sphi 0, %s107
      %s127 = sphi 0, %s127
      %s129 = sphi 0, %s127
      %s130 = sphi 0, %s129
      %s144 = sphi 0, %s130
      %s148 = sphi 0, %s148
      %s150 = sphi 0, %s148
      %s151 = sphi 0, %s150
      %s165 = sphi 0, %s151
      %s169 = sphi 0, %s169
      %s171 = sphi 0, %s169
      %s172 = sphi 0, %s171
      %s186 = sphi 0, %s172
      %s194 = sphi 0, %s196
      %s197 = sphi 0, %s194
      %s198 = sphi 0, %s197
      %s214 = sphi 0, %s198
      %s220 = sphi 0, %s222
      %s223 = sphi 0, %s220
      %s224 = sphi 0, %s223
      %s240 = sphi 0, %s224
    $region4: #{tpu_custom_call.1} parent=1 // loop_header_branch
      %30 = sbr.rel (%p28) target = $region8
    $region5: #{tpu_custom_call.1} parent=1 // loop_body
      %s32 = ssub.s32 %s27, 1
      %s33 = ssub.s32 %s27, 2
      %s40 = sadd.s32 1, %s35
      %p41 = scmp.ge.s32.totalorder %s40, 1
      %s42 = scalar_select %p41, 0, %s40
      %s43 = sadd.s32 1, %s34
      %s44 = scalar_select %p41, %s43, %s34
      %p45 = scmp.ge.s32.totalorder %s44, 2
      %s46 = scalar_select %p45, 0, %s44
      %s47 = ssub.s32 %s35, %s42
      %s48 = ssub.s32 %s34, %s46
      %s49 = sor.u32 %s47, %s48
      %p50 = scmp.eq.s32.totalorder %s49, 0
      %s52 = sadd.s32 %s51, 1
      %s53 = scalar_select %p50, %s51, %s52
      %p56 = pneg %p50
      %p57 = scmp.eq.s32.totalorder %s27, 1
      %p58 = por %p56, %p57
      %p59 = scmp.ne.s32.totalorder %s51, %s54
      %p60 = scmp.eq.s32.totalorder %s27, 0
      %p61 = por %p59, %p60
      %p62 = scmp.ne.s32.totalorder %s51, %s54
      %p63 = scmp.eq.s32.totalorder %s32, 1
      %p64 = por %p62, %p63
      %p65 = scmp.ne.s32.totalorder %s54, %s55
      %p66 = scmp.eq.s32.totalorder %s32, 0
      %p67 = por %p65, %p66
      %p68 = scmp.ne.s32.totalorder %s54, %s55
      %p69 = scmp.eq.s32.totalorder %s33, 1
      %p70 = por %p68, %p69
      %p72 = scmp.ne.s32.totalorder %s55, %s71
      %p73 = scmp.eq.s32.totalorder %s33, 0
      %p74 = por %p72, %p73
      %s75 = ssub.s32 %s34, %s46
      %p76 = scmp.eq.s32.totalorder %s75, 0
      %s78 = sadd.s32 %s77, 1
      %s79 = scalar_select %p76, %s77, %s78
      %p82 = pneg %p76
      %p83 = scmp.eq.s32.totalorder %s27, 1
      %p84 = por %p82, %p83
      %p85 = scmp.ne.s32.totalorder %s77, %s80
      %p86 = scmp.eq.s32.totalorder %s27, 0
      %p87 = por %p85, %p86
      %p88 = scmp.ne.s32.totalorder %s77, %s80
      %p89 = scmp.eq.s32.totalorder %s32, 1
      %p90 = por %p88, %p89
      %p91 = scmp.ne.s32.totalorder %s80, %s81
      %p92 = scmp.eq.s32.totalorder %s32, 0
      %p93 = por %p91, %p92
      %p94 = scmp.ne.s32.totalorder %s80, %s81
      %p95 = scmp.eq.s32.totalorder %s33, 1
      %p96 = por %p94, %p95
      %p98 = scmp.ne.s32.totalorder %s81, %s97
      %p99 = scmp.eq.s32.totalorder %s33, 0
      %p100 = por %p98, %p99
      %s101 = ssub.s32 %s34, %s46
      %p102 = scmp.eq.s32.totalorder %s101, 0
      %s104 = sadd.s32 %s103, 1
      %s105 = scalar_select %p102, %s103, %s104
      %p108 = pneg %p102
      %p109 = scmp.eq.s32.totalorder %s27, 1
      %p110 = por %p108, %p109
      %p111 = scmp.ne.s32.totalorder %s103, %s106
      %p112 = scmp.eq.s32.totalorder %s27, 0
      %p113 = por %p111, %p112
      %p114 = scmp.ne.s32.totalorder %s103, %s106
      %p115 = scmp.eq.s32.totalorder %s32, 1
      %p116 = por %p114, %p115
      %p117 = scmp.ne.s32.totalorder %s106, %s107
      %p118 = scmp.eq.s32.totalorder %s32, 0
      %p119 = por %p117, %p118
      %p120 = scmp.ne.s32.totalorder %s106, %s107
      %p121 = scmp.eq.s32.totalorder %s33, 1
      %p122 = por %p120, %p121
      %p124 = scmp.ne.s32.totalorder %s107, %s123
      %p125 = scmp.eq.s32.totalorder %s33, 0
      %p126 = por %p124, %p125
      %s128 = sadd.s32 %s127, 1
      %p131 = scmp.eq.s32.totalorder %s27, 1
      %p132 = scmp.ne.s32.totalorder %s127, %s129
      %p133 = scmp.eq.s32.totalorder %s27, 0
      %p134 = por %p132, %p133
      %p135 = scmp.ne.s32.totalorder %s127, %s129
      %p136 = scmp.eq.s32.totalorder %s32, 1
      %p137 = por %p135, %p136
      %p138 = scmp.ne.s32.totalorder %s129, %s130
      %p139 = scmp.eq.s32.totalorder %s32, 0
      %p140 = por %p138, %p139
      %p141 = scmp.ne.s32.totalorder %s129, %s130
      %p142 = scmp.eq.s32.totalorder %s33, 1
      %p143 = por %p141, %p142
      %p145 = scmp.ne.s32.totalorder %s130, %s144
      %p146 = scmp.eq.s32.totalorder %s33, 0
      %p147 = por %p145, %p146
      %s149 = sadd.s32 %s148, 1
      %p152 = scmp.eq.s32.totalorder %s27, 1
      %p153 = scmp.ne.s32.totalorder %s148, %s150
      %p154 = scmp.eq.s32.totalorder %s27, 0
      %p155 = por %p153, %p154
      %p156 = scmp.ne.s32.totalorder %s148, %s150
      %p157 = scmp.eq.s32.totalorder %s32, 1
      %p158 = por %p156, %p157
      %p159 = scmp.ne.s32.totalorder %s150, %s151
      %p160 = scmp.eq.s32.totalorder %s32, 0
      %p161 = por %p159, %p160
      %p162 = scmp.ne.s32.totalorder %s150, %s151
      %p163 = scmp.eq.s32.totalorder %s33, 1
      %p164 = por %p162, %p163
      %p166 = scmp.ne.s32.totalorder %s151, %s165
      %p167 = scmp.eq.s32.totalorder %s33, 0
      %p168 = por %p166, %p167
      %s170 = sadd.s32 %s169, 1
      %p173 = scmp.eq.s32.totalorder %s27, 1
      %p174 = scmp.ne.s32.totalorder %s169, %s171
      %p175 = scmp.eq.s32.totalorder %s27, 0
      %p176 = por %p174, %p175
      %p177 = scmp.ne.s32.totalorder %s169, %s171
      %p178 = scmp.eq.s32.totalorder %s32, 1
      %p179 = por %p177, %p178
      %p180 = scmp.ne.s32.totalorder %s171, %s172
      %p181 = scmp.eq.s32.totalorder %s32, 0
      %p182 = por %p180, %p181
      %p183 = scmp.ne.s32.totalorder %s171, %s172
      %p184 = scmp.eq.s32.totalorder %s33, 1
      %p185 = por %p183, %p184
      %p187 = scmp.ne.s32.totalorder %s172, %s186
      %p188 = scmp.eq.s32.totalorder %s33, 0
      %p189 = por %p187, %p188
      %s190 = ssub.s32 %s35, %s42
      %s191 = ssub.s32 %s34, %s46
      %s192 = sor.u32 %s190, %s191
      %p193 = scmp.eq.s32.totalorder %s192, 0
      %s195 = sadd.s32 %s194, 1
      %s196 = scalar_select %p193, %s194, %s195
      %p199 = pneg %p193
      %p200 = scmp.eq.s32.totalorder %s27, 1
      %p201 = por %p199, %p200
      %p202 = scmp.ne.s32.totalorder %s194, %s197
      %p203 = scmp.eq.s32.totalorder %s27, 0
      %p204 = por %p202, %p203
      %p205 = scmp.ne.s32.totalorder %s194, %s197
      %p206 = scmp.eq.s32.totalorder %s32, 1
      %p207 = por %p205, %p206
      %p208 = scmp.ne.s32.totalorder %s197, %s198
      %p209 = scmp.eq.s32.totalorder %s32, 0
      %p210 = por %p208, %p209
      %p211 = scmp.ne.s32.totalorder %s197, %s198
      %p212 = scmp.eq.s32.totalorder %s33, 1
      %p213 = por %p211, %p212
      %p215 = scmp.ne.s32.totalorder %s198, %s214
      %p216 = scmp.eq.s32.totalorder %s33, 0
      %p217 = por %p215, %p216
      %s218 = ssub.s32 %s34, %s46
      %p219 = scmp.eq.s32.totalorder %s218, 0
      %s221 = sadd.s32 %s220, 1
      %s222 = scalar_select %p219, %s220, %s221
      %p225 = pneg %p219
      %p226 = scmp.eq.s32.totalorder %s27, 1
      %p227 = por %p225, %p226
      %p228 = scmp.ne.s32.totalorder %s220, %s223
      %p229 = scmp.eq.s32.totalorder %s27, 0
      %p230 = por %p228, %p229
      %p231 = scmp.ne.s32.totalorder %s220, %s223
      %p232 = scmp.eq.s32.totalorder %s32, 1
      %p233 = por %p231, %p232
      %p234 = scmp.ne.s32.totalorder %s223, %s224
      %p235 = scmp.eq.s32.totalorder %s32, 0
      %p236 = por %p234, %p235
      %p237 = scmp.ne.s32.totalorder %s223, %s224
      %p238 = scmp.eq.s32.totalorder %s33, 1
      %p239 = por %p237, %p238
      %p241 = scmp.ne.s32.totalorder %s224, %s240
      %p242 = scmp.eq.s32.totalorder %s33, 0
      %p243 = por %p241, %p242
      %p244 = scmp.le.s32.totalorder 1, %s27
      %p245 = scmp.lt.s32.totalorder %s27, 3
      %p246 = pnand %p244, %p245
      %p247 = pneg %p246
      // Predicated region
      $region9: #{tpu_custom_call.1} parent=5 // pred_check
        _
      $region10: #{tpu_custom_call.1} parent=5 // pred_check_branch
        %249 = sbr.rel (%p246) target = $region12
      $region11: #{tpu_custom_call.1} parent=5 // pred_region
        %s250 = ssub.s32 %s27, 1
        // Predicated region
        $region13: #{tpu_custom_call.1} parent=11 // pred_check
          %p251 = pneg %p140
        $region14: #{tpu_custom_call.1} parent=11 // pred_check_branch
          %253 = sbr.rel (%p251) target = $region16
        $region15: #{tpu_custom_call.1} parent=11 // pred_region
          %s255 = ssub.s32 1024, 1024
          %256 = vsyncadd [#allocation11], %s255
          %s257 = sshll.u32 [#allocation10], 4
          %s258 = int_to_ptr.vmem [resolvable:$true] %s257
          %263 = dma.hbm_to_vmem [thread:$0]  %s3, 1024, %s258, [#allocation11], 256, 256, 16
        $region16: #{tpu_custom_call.1} parent=11 // pred_fallthru
          _
        // Predicated region
        $region17: #{tpu_custom_call.1} parent=11 // pred_check
          %p264 = pneg %p161
        $region18: #{tpu_custom_call.1} parent=11 // pred_check_branch
          %266 = sbr.rel (%p264) target = $region20
        $region19: #{tpu_custom_call.1} parent=11 // pred_region
          %s268 = ssub.s32 4096, 4096
          %269 = vsyncadd [#allocation11], %s268
          %s270 = sshll.u32 [#allocation12], 4
          %s271 = int_to_ptr.vmem [resolvable:$true] %s270
          %276 = dma.hbm_to_vmem [thread:$0]  %s4, 4096, %s271, [#allocation11], 256, 256, 16
        $region20: #{tpu_custom_call.1} parent=11 // pred_fallthru
          _
        // Predicated region
        $region21: #{tpu_custom_call.1} parent=11 // pred_check
          %p277 = pneg %p182
        $region22: #{tpu_custom_call.1} parent=11 // pred_check_branch
          %279 = sbr.rel (%p277) target = $region24
        $region23: #{tpu_custom_call.1} parent=11 // pred_region
          _
        $region24: #{tpu_custom_call.1} parent=11 // pred_fallthru
          _
      $region12: #{tpu_custom_call.1} parent=5 // pred_fallthru
        _
      %p280 = scmp.lt.s32.totalorder %s27, 2
      // Predicated region
      $region25: #{tpu_custom_call.1} parent=5 // pred_check
        %p281 = pneg %p280
      $region26: #{tpu_custom_call.1} parent=5 // pred_check_branch
        %283 = sbr.rel (%p281) target = $region28
      $region27: #{tpu_custom_call.1} parent=5 // pred_region
        // Predicated region
        $region29: #{tpu_custom_call.1} parent=27 // pred_check
          %p284 = pneg %p61
        $region30: #{tpu_custom_call.1} parent=27 // pred_check_branch
          %286 = sbr.rel (%p284) target = $region32
        $region31: #{tpu_custom_call.1} parent=27 // pred_region
          %s287 = sand.u32 %s51, 1
          %s288 = scalar_lea.sflag [#allocation5], %s287
          %s289 = sand.u32 %s51, 1
          %s290 = smul.addr %s289, 8
          %s291 = scalar_lea.vmem [#allocation4], %s290
          %s292 = smul.u32 2, %s34
          %s294 = ssub.s32 128, 128
          %295 = vsyncadd %s288, %s294
          %s296 = smul.addr %s35, 4
          %s297 = sadd.s32 %s292, %s296
          %s298 = smul.addr %s297, 64
          %s299 = scalar_lea.hbm %s0, %s298
          %s300 = sshll.u32 %s291, 4
          %s301 = int_to_ptr.vmem [resolvable:$true] %s300
          %306 = dma.hbm_to_vmem [thread:$0]  %s299, 128, %s301, %s288, 64, 64, 4
        $region32: #{tpu_custom_call.1} parent=27 // pred_fallthru
          _
        // Predicated region
        $region33: #{tpu_custom_call.1} parent=27 // pred_check
          %p307 = pneg %p87
        $region34: #{tpu_custom_call.1} parent=27 // pred_check_branch
          %309 = sbr.rel (%p307) target = $region36
        $region35: #{tpu_custom_call.1} parent=27 // pred_region
          %s310 = sand.u32 %s27, 1
          %s311 = scalar_lea.sflag [#allocation8], %s310
          %s312 = sand.u32 %s77, 1
          %s313 = smul.addr %s312, 8
          %s314 = scalar_lea.vmem [#allocation7], %s313
          %s315 = smul.u32 2, %s34
          %s317 = ssub.s32 128, 128
          %318 = vsyncadd %s311, %s317
          %s319 = smul.addr %s315, 64
          %s320 = scalar_lea.hbm %s1, %s319
          %s321 = sshll.u32 %s314, 4
          %s322 = int_to_ptr.vmem [resolvable:$true] %s321
          %327 = dma.hbm_to_vmem [thread:$0]  %s320, 128, %s322, %s311, 64, 64, 4
        $region36: #{tpu_custom_call.1} parent=27 // pred_fallthru
          _
        // Predicated region
        $region37: #{tpu_custom_call.1} parent=27 // pred_check
          %p328 = pneg %p113
        $region38: #{tpu_custom_call.1} parent=27 // pred_check_branch
          %330 = sbr.rel (%p328) target = $region40
        $region39: #{tpu_custom_call.1} parent=27 // pred_region
          %s331 = sand.u32 %s27, 1
          %s332 = scalar_lea.sflag [#allocation8], %s331
          %s333 = sand.u32 %s103, 1
          %s334 = smul.addr %s333, 16
          %s335 = scalar_lea.vmem [#allocation9], %s334
          %s336 = smul.u32 2, %s34
          %s338 = ssub.s32 256, 256
          %339 = vsyncadd %s332, %s338
          %s340 = smul.addr %s336, 128
          %s341 = scalar_lea.hbm %s2, %s340
          %s342 = sshll.u32 %s335, 4
          %s343 = int_to_ptr.vmem [resolvable:$true] %s342
          %348 = dma.hbm_to_vmem [thread:$0]  %s341, 256, %s343, %s332, 128, 128, 8
        $region40: #{tpu_custom_call.1} parent=27 // pred_fallthru
          _
      $region28: #{tpu_custom_call.1} parent=5 // pred_fallthru
        _
      %p349 = scmp.le.s32.totalorder 1, %s27
      %p350 = scmp.lt.s32.totalorder %s27, 3
      %p351 = pnand %p349, %p350
      %p352 = pneg %p351
      // Predicated region
      $region41: #{tpu_custom_call.1} parent=5 // pred_check
        _
      $region42: #{tpu_custom_call.1} parent=5 // pred_check_branch
        %354 = sbr.rel (%p351) target = $region44
      $region43: #{tpu_custom_call.1} parent=5 // pred_region
        %s355 = ssub.s32 %s27, 1
        %s356 = sand.u32 %s54, 1
        %s357 = scalar_lea.sflag [#allocation5], %s356
        %s358 = sand.u32 %s54, 1
        %s359 = smul.addr %s358, 8
        %s360 = scalar_lea.vmem [#allocation4], %s359
        // Predicated region
        $region45: #{tpu_custom_call.1} parent=43 // pred_check
          %p361 = pneg %p67
        $region46: #{tpu_custom_call.1} parent=43 // pred_check_branch
          %363 = sbr.rel (%p361) target = $region48
        $region47: #{tpu_custom_call.1} parent=43 // pred_region
          %364 = dma.done %s357, 128
        $region48: #{tpu_custom_call.1} parent=43 // pred_fallthru
          _
        %s365 = sand.u32 %s32, 1
        %s366 = scalar_lea.sflag [#allocation8], %s365
        %s367 = sand.u32 %s80, 1
        %s368 = smul.addr %s367, 8
        %s369 = scalar_lea.vmem [#allocation7], %s368
        // Predicated region
        $region49: #{tpu_custom_call.1} parent=43 // pred_check
          %p370 = pneg %p93
        $region50: #{tpu_custom_call.1} parent=43 // pred_check_branch
          %372 = sbr.rel (%p370) target = $region52
        $region51: #{tpu_custom_call.1} parent=43 // pred_region
          %373 = dma.done %s366, 128
        $region52: #{tpu_custom_call.1} parent=43 // pred_fallthru
          _
        %s374 = sand.u32 %s32, 1
        %s375 = scalar_lea.sflag [#allocation8], %s374
        %s376 = sand.u32 %s106, 1
        %s377 = smul.addr %s376, 16
        %s378 = scalar_lea.vmem [#allocation9], %s377
        // Predicated region
        $region53: #{tpu_custom_call.1} parent=43 // pred_check
          %p379 = pneg %p119
        $region54: #{tpu_custom_call.1} parent=43 // pred_check_branch
          %381 = sbr.rel (%p379) target = $region56
        $region55: #{tpu_custom_call.1} parent=43 // pred_region
          %382 = dma.done %s375, 256
        $region56: #{tpu_custom_call.1} parent=43 // pred_fallthru
          _
        // Predicated region
        $region57: #{tpu_custom_call.1} parent=43 // pred_check
          %p383 = pneg %p140
        $region58: #{tpu_custom_call.1} parent=43 // pred_check_branch
          %385 = sbr.rel (%p383) target = $region60
        $region59: #{tpu_custom_call.1} parent=43 // pred_region
          %386 = dma.done [#allocation11], 1024
        $region60: #{tpu_custom_call.1} parent=43 // pred_fallthru
          _
        // Predicated region
        $region61: #{tpu_custom_call.1} parent=43 // pred_check
          %p387 = pneg %p161
        $region62: #{tpu_custom_call.1} parent=43 // pred_check_branch
          %389 = sbr.rel (%p387) target = $region64
        $region63: #{tpu_custom_call.1} parent=43 // pred_region
          %390 = dma.done [#allocation11], 4096
        $region64: #{tpu_custom_call.1} parent=43 // pred_fallthru
          _
        %s391 = sand.u32 %s54, 1
        %s392 = scalar_lea.sflag [#allocation5], %s391
        %s393 = sand.u32 %s54, 1
        %s394 = smul.addr %s393, 8
        %s395 = scalar_lea.vmem [#allocation4], %s394
        %p396 = pneg %p67
        %p397 = pneg %p64
        %s398 = sand.u32 %s32, 1
        %s399 = scalar_lea.sflag [#allocation8], %s398
        %s400 = sand.u32 %s80, 1
        %s401 = smul.addr %s400, 8
        %s402 = scalar_lea.vmem [#allocation7], %s401
        %p403 = pneg %p93
        %p404 = pneg %p90
        %s405 = sand.u32 %s32, 1
        %s406 = scalar_lea.sflag [#allocation8], %s405
        %s407 = sand.u32 %s106, 1
        %s408 = smul.addr %s407, 16
        %s409 = scalar_lea.vmem [#allocation9], %s408
        %p410 = pneg %p119
        %p411 = pneg %p116
        %p412 = pneg %p140
        %p413 = pneg %p137
        %p414 = pneg %p161
        %p415 = pneg %p158
        %p416 = pneg %p182
        %p417 = pneg %p179
        %p418 = pneg %p210
        %p419 = pneg %p207
        %s420 = sand.u32 %s197, 1
        %s421 = scalar_lea.sflag [#allocation6], %s420
        %s422 = sand.u32 %s197, 1
        %s423 = smul.addr %s422, 8
        %s424 = scalar_lea.vmem [#allocation13], %s423
        %p425 = pneg %p236
        %p426 = pneg %p233
        %s427 = sand.u32 %s223, 1
        %s428 = scalar_lea.sflag [#allocation15], %s427
        %s429 = sand.u32 %s223, 1
        %s430 = smul.addr %s429, 16
        %s431 = scalar_lea.vmem [#allocation14], %s430
        %s432 = smul.u32 2, %s36
        %s433 = smul.u32 2, %s36
        %s434 = smul.u32 2, %s36
        %s435 = smul.u32 2, %s36
        %s436 = smul.u32 2, %s36
        %p438 = scmp.eq.s32.totalorder %s37, 0
        // Predicated region
        $region65: #{tpu_custom_call.1} parent=43 // pred_check
          %p439 = pneg %p438
        $region66: #{tpu_custom_call.1} parent=43 // pred_check_branch
          %441 = sbr.rel (%p439) target = $region68
        $region67: #{tpu_custom_call.1} parent=43 // pred_region
          %v442 = vld [vmem:[%s369] sm:$0xf]
          %v443 = vld [vmem:[%s369 + $0x4] sm:$0xf]
          %444 = vst [vmem:[#allocation2] sm:$0xf] %v442
          %445 = vst [vmem:[#allocation2 + $0x4] sm:$0xf] %v443
          %v446 = vld [vmem:[%s378] sm:$0xff]
          %v447 = vld [vmem:[%s378 + $0x8] sm:$0xff]
          %448 = vst [vmem:[#allocation3] sm:$0xff] %v446
          %449 = vst [vmem:[#allocation3 + $0x8] sm:$0xff] %v447
        $region68: #{tpu_custom_call.1} parent=43 // pred_fallthru
          _
        %v450 = vld [vmem:[%s360] sm:$0xf]
        %v451 = vld [vmem:[%s360 + $0x4] sm:$0xf]
        %v452 = vld [vmem:[#allocation10] sm:$0xff]
        %v453 = vld [vmem:[#allocation10 + $0x8] sm:$0xff]
        %v454 = vld [vmem:[#allocation10 + $0x10] sm:$0xff]
        %v455 = vld [vmem:[#allocation10 + $0x18] sm:$0xff]
        %v456 = vld [vmem:[#allocation10 + $0x20] sm:$0xff]
        %v457 = vld [vmem:[#allocation10 + $0x28] sm:$0xff]
        %v458 = vld [vmem:[#allocation10 + $0x30] sm:$0xff]
        %v459 = vld [vmem:[#allocation10 + $0x38] sm:$0xff]
        %v460 = vld [vmem:[#allocation2] sm:$0xf]
        %v461 = vld [vmem:[#allocation2 + $0x4] sm:$0xf]
        %v462 = vld [vmem:[#allocation12] sm:$0xff]
        %v463 = vld [vmem:[#allocation12 + $0x8] sm:$0xff]
        %v464 = vld [vmem:[#allocation12 + $0x10] sm:$0xff]
        %v465 = vld [vmem:[#allocation12 + $0x18] sm:$0xff]
        %v466 = vld [vmem:[#allocation12 + $0x20] sm:$0xff]
        %v467 = vld [vmem:[#allocation12 + $0x28] sm:$0xff]
        %v468 = vld [vmem:[#allocation12 + $0x30] sm:$0xff]
        %v469 = vld [vmem:[#allocation12 + $0x38] sm:$0xff]
        %v470 = vld [vmem:[#allocation12 + $0x40] sm:$0xff]
        %v471 = vld [vmem:[#allocation12 + $0x48] sm:$0xff]
        %v472 = vld [vmem:[#allocation12 + $0x50] sm:$0xff]
        %v473 = vld [vmem:[#allocation12 + $0x58] sm:$0xff]
        %v474 = vld [vmem:[#allocation12 + $0x60] sm:$0xff]
        %v475 = vld [vmem:[#allocation12 + $0x68] sm:$0xff]
        %v476 = vld [vmem:[#allocation12 + $0x70] sm:$0xff]
        %v477 = vld [vmem:[#allocation12 + $0x78] sm:$0xff]
        %v478 = vld [vmem:[#allocation12 + $0x80] sm:$0xff]
        %v479 = vld [vmem:[#allocation12 + $0x88] sm:$0xff]
        %v480 = vld [vmem:[#allocation12 + $0x90] sm:$0xff]
        %v481 = vld [vmem:[#allocation12 + $0x98] sm:$0xff]
        %v482 = vld [vmem:[#allocation12 + $0xa0] sm:$0xff]
        %v483 = vld [vmem:[#allocation12 + $0xa8] sm:$0xff]
        %v484 = vld [vmem:[#allocation12 + $0xb0] sm:$0xff]
        %v485 = vld [vmem:[#allocation12 + $0xb8] sm:$0xff]
        %v486 = vld [vmem:[#allocation12 + $0xc0] sm:$0xff]
        %v487 = vld [vmem:[#allocation12 + $0xc8] sm:$0xff]
        %v488 = vld [vmem:[#allocation12 + $0xd0] sm:$0xff]
        %v489 = vld [vmem:[#allocation12 + $0xd8] sm:$0xff]
        %v490 = vld [vmem:[#allocation12 + $0xe0] sm:$0xff]
        %v491 = vld [vmem:[#allocation12 + $0xe8] sm:$0xff]
        %v492 = vld [vmem:[#allocation12 + $0xf0] sm:$0xff]
        %v493 = vld [vmem:[#allocation12 + $0xf8] sm:$0xff]
        %v496 = vunpack.c.l.b16 %v460
        %v497 = vunpack.c.l.b16 %v461
        %v498 = vpack.c.b16 %v497, %v496
        %v532 = vunpack.c.l.b16 %v462
        %v533 = vunpack.c.h.b16 %v462
        %v534 = vunpack.c.l.b16 %v463
        %v535 = vunpack.c.h.b16 %v463
        %v536 = vunpack.c.l.b16 %v464
        %v537 = vunpack.c.h.b16 %v464
        %v538 = vunpack.c.l.b16 %v465
        %v539 = vunpack.c.h.b16 %v465
        %v540 = vunpack.c.l.b16 %v466
        %v541 = vunpack.c.h.b16 %v466
        %v542 = vunpack.c.l.b16 %v467
        %v543 = vunpack.c.h.b16 %v467
        %v544 = vunpack.c.l.b16 %v468
        %v545 = vunpack.c.h.b16 %v468
        %v546 = vunpack.c.l.b16 %v469
        %v547 = vunpack.c.h.b16 %v469
        %v548 = vunpack.c.l.b16 %v470
        %v549 = vunpack.c.h.b16 %v470
        %v550 = vunpack.c.l.b16 %v471
        %v551 = vunpack.c.h.b16 %v471
        %v552 = vunpack.c.l.b16 %v472
        %v553 = vunpack.c.h.b16 %v472
        %v554 = vunpack.c.l.b16 %v473
        %v555 = vunpack.c.h.b16 %v473
        %v556 = vunpack.c.l.b16 %v474
        %v557 = vunpack.c.h.b16 %v474
        %v558 = vunpack.c.l.b16 %v475
        %v559 = vunpack.c.h.b16 %v475
        %v560 = vunpack.c.l.b16 %v476
        %v561 = vunpack.c.h.b16 %v476
        %v562 = vunpack.c.l.b16 %v477
        %v563 = vunpack.c.h.b16 %v477
        %v564 = vunpack.c.l.b16 %v478
        %v565 = vunpack.c.h.b16 %v478
        %v566 = vunpack.c.l.b16 %v479
        %v567 = vunpack.c.h.b16 %v479
        %v568 = vunpack.c.l.b16 %v480
        %v569 = vunpack.c.h.b16 %v480
        %v570 = vunpack.c.l.b16 %v481
        %v571 = vunpack.c.h.b16 %v481
        %v572 = vunpack.c.l.b16 %v482
        %v573 = vunpack.c.h.b16 %v482
        %v574 = vunpack.c.l.b16 %v483
        %v575 = vunpack.c.h.b16 %v483
        %v576 = vunpack.c.l.b16 %v484
        %v577 = vunpack.c.h.b16 %v484
        %v578 = vunpack.c.l.b16 %v485
        %v579 = vunpack.c.h.b16 %v485
        %v580 = vunpack.c.l.b16 %v486
        %v581 = vunpack.c.h.b16 %v486
        %v582 = vunpack.c.l.b16 %v487
        %v583 = vunpack.c.h.b16 %v487
        %v584 = vunpack.c.l.b16 %v488
        %v585 = vunpack.c.h.b16 %v488
        %v586 = vunpack.c.l.b16 %v489
        %v587 = vunpack.c.h.b16 %v489
        %v588 = vunpack.c.l.b16 %v490
        %v589 = vunpack.c.h.b16 %v490
        %v590 = vunpack.c.l.b16 %v491
        %v591 = vunpack.c.h.b16 %v491
        %v592 = vunpack.c.l.b16 %v492
        %v593 = vunpack.c.h.b16 %v492
        %v594 = vunpack.c.l.b16 %v493
        %v595 = vunpack.c.h.b16 %v493
        %v596 = vpack.c.b16 %v536, %v532
        %v597 = vpack.c.b16 %v537, %v533
        %v598 = vpack.c.b16 %v538, %v534
        %v599 = vpack.c.b16 %v539, %v535
        %v600 = vpack.c.b16 %v544, %v540
        %v601 = vpack.c.b16 %v545, %v541
        %v602 = vpack.c.b16 %v546, %v542
        %v603 = vpack.c.b16 %v547, %v543
        %v604 = vpack.c.b16 %v552, %v548
        %v605 = vpack.c.b16 %v553, %v549
        %v606 = vpack.c.b16 %v554, %v550
        %v607 = vpack.c.b16 %v555, %v551
        %v608 = vpack.c.b16 %v560, %v556
        %v609 = vpack.c.b16 %v561, %v557
        %v610 = vpack.c.b16 %v562, %v558
        %v611 = vpack.c.b16 %v563, %v559
        %v612 = vpack.c.b16 %v568, %v564
        %v613 = vpack.c.b16 %v569, %v565
        %v614 = vpack.c.b16 %v570, %v566
        %v615 = vpack.c.b16 %v571, %v567
        %v616 = vpack.c.b16 %v576, %v572
        %v617 = vpack.c.b16 %v577, %v573
        %v618 = vpack.c.b16 %v578, %v574
        %v619 = vpack.c.b16 %v579, %v575
        %v620 = vpack.c.b16 %v584, %v580
        %v621 = vpack.c.b16 %v585, %v581
        %v622 = vpack.c.b16 %v586, %v582
        %v623 = vpack.c.b16 %v587, %v583
        %v624 = vpack.c.b16 %v592, %v588
        %v625 = vpack.c.b16 %v593, %v589
        %v626 = vpack.c.b16 %v594, %v590
        %v627 = vpack.c.b16 %v595, %v591
        %660 = vmatprep.subr.bf16.mxu0 %v625
        %661 = vmatpush1.bf16.msra.mxu0 %v624
        %662 = vmatprep.subr.bf16.mxu0 %v621
        %663 = vmatpush1.bf16.msra.mxu0 %v620
        %664 = vmatprep.subr.bf16.mxu0 %v617
        %665 = vmatpush1.bf16.msra.mxu0 %v616
        %666 = vmatprep.subr.bf16.mxu0 %v613
        %667 = vmatpush1.bf16.msra.mxu0 %v612
        %668 = vmatprep.subr.bf16.mxu0 %v609
        %669 = vmatpush1.bf16.msra.mxu0 %v608
        %670 = vmatprep.subr.bf16.mxu0 %v605
        %671 = vmatpush1.bf16.msra.mxu0 %v604
        %672 = vmatprep.subr.bf16.mxu0 %v601
        %673 = vmatpush1.bf16.msra.mxu0 %v600
        %674 = vmatprep.subr.bf16.mxu0 %v597
        %675 = vmatpush1.bf16.msra.mxu0 %v596
        %676 = vmatprep.subr.bf16.mxu0 0
        %677 = vmatpush2.bf16.msra.mxu0 0
        %678 = vmatprep.subr.bf16.mxu0 0
        %679 = vmatpush2.bf16.msra.mxu0 0
        %680 = vmatprep.subr.bf16.mxu0 0
        %681 = vmatpush2.bf16.msra.mxu0 0
        %682 = vmatprep.subr.bf16.mxu0 0
        %683 = vmatpush2.bf16.msra.mxu0 0
        %684 = vmatprep.subr.bf16.mxu0 0
        %685 = vmatpush2.bf16.msra.mxu0 0
        %686 = vmatprep.subr.bf16.mxu0 0
        %687 = vmatpush2.bf16.msra.mxu0 0
        %688 = vmatprep.subr.bf16.mxu0 0
        %689 = vmatpush2.bf16.msra.mxu0 0
        %690 = vmatprep.subr.bf16.mxu0 0
        %691 = vmatpush2.bf16.msra.mxu0 0
        %692 = vmatprep.mubr.bf16.mxu0 0
        %693 = vmatmul.mubr.bf16.gmra.mxu0 %v498
        %v694 = vpop.f32.mrf.mxu0
        %v695 = vadd.f32 0.0, %v694
        %v696 = vpop.f32.mrf.mxu0
        %v697 = vadd.f32 0.0, %v696
        %v698 = vpop.f32.mrf.mxu0
        %v699 = vadd.f32 0.0, %v698
        %v700 = vpop.f32.mrf.mxu0
        %v701 = vadd.f32 0.0, %v700
        %702 = vdwg.mxu0
        %703 = vmatprep.subr.bf16.mxu0 %v627
        %704 = vmatpush1.bf16.msra.mxu0 %v626
        %705 = vmatprep.subr.bf16.mxu0 %v623
        %706 = vmatpush1.bf16.msra.mxu0 %v622
        %707 = vmatprep.subr.bf16.mxu0 %v619
        %708 = vmatpush1.bf16.msra.mxu0 %v618
        %709 = vmatprep.subr.bf16.mxu0 %v615
        %710 = vmatpush1.bf16.msra.mxu0 %v614
        %711 = vmatprep.subr.bf16.mxu0 %v611
        %712 = vmatpush1.bf16.msra.mxu0 %v610
        %713 = vmatprep.subr.bf16.mxu0 %v607
        %714 = vmatpush1.bf16.msra.mxu0 %v606
        %715 = vmatprep.subr.bf16.mxu0 %v603
        %716 = vmatpush1.bf16.msra.mxu0 %v602
        %717 = vmatprep.subr.bf16.mxu0 %v599
        %718 = vmatpush1.bf16.msra.mxu0 %v598
        %719 = vmatprep.subr.bf16.mxu0 0
        %720 = vmatpush2.bf16.msra.mxu0 0
        %721 = vmatprep.subr.bf16.mxu0 0
        %722 = vmatpush2.bf16.msra.mxu0 0
        %723 = vmatprep.subr.bf16.mxu0 0
        %724 = vmatpush2.bf16.msra.mxu0 0
        %725 = vmatprep.subr.bf16.mxu0 0
        %726 = vmatpush2.bf16.msra.mxu0 0
        %727 = vmatprep.subr.bf16.mxu0 0
        %728 = vmatpush2.bf16.msra.mxu0 0
        %729 = vmatprep.subr.bf16.mxu0 0
        %730 = vmatpush2.bf16.msra.mxu0 0
        %731 = vmatprep.subr.bf16.mxu0 0
        %732 = vmatpush2.bf16.msra.mxu0 0
        %733 = vmatprep.subr.bf16.mxu0 0
        %734 = vmatpush2.bf16.msra.mxu0 0
        %735 = vmatprep.mubr.bf16.mxu0 0
        %736 = vmatmul.mubr.bf16.gmra.mxu0 %v498
        %v737 = vpop.f32.mrf.mxu0
        %v738 = vadd.f32 0.0, %v737
        %v739 = vpop.f32.mrf.mxu0
        %v740 = vadd.f32 0.0, %v739
        %v741 = vpop.f32.mrf.mxu0
        %v742 = vadd.f32 0.0, %v741
        %v743 = vpop.f32.mrf.mxu0
        %v744 = vadd.f32 0.0, %v743
        %745 = vdwg.mxu0
        %v748 = vunpack.c.l.b16 %v450
        %v749 = vunpack.c.l.b16 %v451
        %v750 = vpack.c.b16 %v749, %v748
        %v759 = vunpack.c.l.b16 %v452
        %v760 = vunpack.c.h.b16 %v452
        %v761 = vunpack.c.l.b16 %v453
        %v762 = vunpack.c.h.b16 %v453
        %v763 = vunpack.c.l.b16 %v454
        %v764 = vunpack.c.h.b16 %v454
        %v765 = vunpack.c.l.b16 %v455
        %v766 = vunpack.c.h.b16 %v455
        %v767 = vunpack.c.l.b16 %v456
        %v768 = vunpack.c.h.b16 %v456
        %v769 = vunpack.c.l.b16 %v457
        %v770 = vunpack.c.h.b16 %v457
        %v771 = vunpack.c.l.b16 %v458
        %v772 = vunpack.c.h.b16 %v458
        %v773 = vunpack.c.l.b16 %v459
        %v774 = vunpack.c.h.b16 %v459
        %v775 = vpack.c.b16 %v763, %v759
        %v776 = vpack.c.b16 %v764, %v760
        %v777 = vpack.c.b16 %v765, %v761
        %v778 = vpack.c.b16 %v766, %v762
        %v779 = vpack.c.b16 %v771, %v767
        %v780 = vpack.c.b16 %v772, %v768
        %v781 = vpack.c.b16 %v773, %v769
        %v782 = vpack.c.b16 %v774, %v770
        %vm791 = vcmask 261120
        %v793 = vsel %vm791, %v750, 0
        %795 = vmatprep.subr.bf16.mxu0 0
        %796 = vmatpush1.bf16.msra.mxu0 0
        %797 = vmatprep.subr.bf16.mxu0 0
        %798 = vmatpush1.bf16.msra.mxu0 0
        %799 = vmatprep.subr.bf16.mxu0 0
        %800 = vmatpush1.bf16.msra.mxu0 0
        %801 = vmatprep.subr.bf16.mxu0 0
        %802 = vmatpush1.bf16.msra.mxu0 0
        %803 = vmatprep.subr.bf16.mxu0 0
        %804 = vmatpush1.bf16.msra.mxu0 0
        %805 = vmatprep.subr.bf16.mxu0 0
        %806 = vmatpush1.bf16.msra.mxu0 0
        %807 = vmatprep.subr.bf16.mxu0 %v780
        %808 = vmatpush1.bf16.msra.mxu0 %v779
        %809 = vmatprep.subr.bf16.mxu0 %v776
        %810 = vmatpush1.bf16.msra.mxu0 %v775
        %811 = vmatprep.subr.bf16.mxu0 0
        %812 = vmatpush2.bf16.msra.mxu0 0
        %813 = vmatprep.subr.bf16.mxu0 0
        %814 = vmatpush2.bf16.msra.mxu0 0
        %815 = vmatprep.subr.bf16.mxu0 0
        %816 = vmatpush2.bf16.msra.mxu0 0
        %817 = vmatprep.subr.bf16.mxu0 0
        %818 = vmatpush2.bf16.msra.mxu0 0
        %819 = vmatprep.subr.bf16.mxu0 0
        %820 = vmatpush2.bf16.msra.mxu0 0
        %821 = vmatprep.subr.bf16.mxu0 0
        %822 = vmatpush2.bf16.msra.mxu0 0
        %823 = vmatprep.subr.bf16.mxu0 0
        %824 = vmatpush2.bf16.msra.mxu0 0
        %825 = vmatprep.subr.bf16.mxu0 0
        %826 = vmatpush2.bf16.msra.mxu0 0
        %827 = vmatprep.mubr.bf16.mxu0 0
        %828 = vmatmul.mubr.bf16.gmra.mxu0 %v793
        %v829 = vpop.f32.mrf.mxu0
        %v830 = vadd.f32 %v695, %v829
        %v831 = vpop.f32.mrf.mxu0
        %v832 = vadd.f32 %v697, %v831
        %v833 = vpop.f32.mrf.mxu0
        %v834 = vadd.f32 %v699, %v833
        %v835 = vpop.f32.mrf.mxu0
        %v836 = vadd.f32 %v701, %v835
        %837 = vdwg.mxu0
        %838 = vmatprep.subr.bf16.mxu0 0
        %839 = vmatpush1.bf16.msra.mxu0 0
        %840 = vmatprep.subr.bf16.mxu0 0
        %841 = vmatpush1.bf16.msra.mxu0 0
        %842 = vmatprep.subr.bf16.mxu0 0
        %843 = vmatpush1.bf16.msra.mxu0 0
        %844 = vmatprep.subr.bf16.mxu0 0
        %845 = vmatpush1.bf16.msra.mxu0 0
        %846 = vmatprep.subr.bf16.mxu0 0
        %847 = vmatpush1.bf16.msra.mxu0 0
        %848 = vmatprep.subr.bf16.mxu0 0
        %849 = vmatpush1.bf16.msra.mxu0 0
        %850 = vmatprep.subr.bf16.mxu0 %v782
        %851 = vmatpush1.bf16.msra.mxu0 %v781
        %852 = vmatprep.subr.bf16.mxu0 %v778
        %853 = vmatpush1.bf16.msra.mxu0 %v777
        %854 = vmatprep.subr.bf16.mxu0 0
        %855 = vmatpush2.bf16.msra.mxu0 0
        %856 = vmatprep.subr.bf16.mxu0 0
        %857 = vmatpush2.bf16.msra.mxu0 0
        %858 = vmatprep.subr.bf16.mxu0 0
        %859 = vmatpush2.bf16.msra.mxu0 0
        %860 = vmatprep.subr.bf16.mxu0 0
        %861 = vmatpush2.bf16.msra.mxu0 0
        %862 = vmatprep.subr.bf16.mxu0 0
        %863 = vmatpush2.bf16.msra.mxu0 0
        %864 = vmatprep.subr.bf16.mxu0 0
        %865 = vmatpush2.bf16.msra.mxu0 0
        %866 = vmatprep.subr.bf16.mxu0 0
        %867 = vmatpush2.bf16.msra.mxu0 0
        %868 = vmatprep.subr.bf16.mxu0 0
        %869 = vmatpush2.bf16.msra.mxu0 0
        %870 = vmatprep.mubr.bf16.mxu0 0
        %871 = vmatmul.mubr.bf16.gmra.mxu0 %v793
        %v872 = vpop.f32.mrf.mxu0
        %v873 = vadd.f32 %v738, %v872
        %v874 = vpop.f32.mrf.mxu0
        %v875 = vadd.f32 %v740, %v874
        %v876 = vpop.f32.mrf.mxu0
        %v877 = vadd.f32 %v742, %v876
        %v878 = vpop.f32.mrf.mxu0
        %v879 = vadd.f32 %v744, %v878
        %880 = vdwg.mxu0
        %v881 = vld [vmem:[%s5] sm:$0xf]
        %v883 = vlaneseq
        %v884 = vshrl.u32 %v883, 7
        %v885 = vsub.s32 0, %v884
        %v886 = vrot.slane %v881, %v885
        %v887 = vlaneseq
        %v888 = vshrl.u32 %v887, 7
        %v889 = vsub.s32 1, %v888
        %v890 = vrot.slane %v881, %v889
        %v891 = vlaneseq
        %v892 = vshrl.u32 %v891, 7
        %v893 = vsub.s32 2, %v892
        %v894 = vrot.slane %v881, %v893
        %v895 = vlaneseq
        %v896 = vshrl.u32 %v895, 7
        %v897 = vsub.s32 3, %v896
        %v898 = vrot.slane %v881, %v897
        %v903 = vadd.f32 %v830, %v886
        %v904 = vadd.f32 %v832, %v890
        %v905 = vadd.f32 %v873, %v894
        %v906 = vadd.f32 %v875, %v898
        %v907 = vadd.f32 %v834, %v886
        %v908 = vadd.f32 %v836, %v890
        %v909 = vadd.f32 %v877, %v894
        %v910 = vadd.f32 %v879, %v898
        %v911 = vmul.f32 %v903, 0.5
        %v912 = vmul.f32 %v907, 0.5
        %v913 = vtanh.pop %v911
        %v914 = vtanh.pop %v912
        %v915 = vmul.f32 %v913, 0.5
        %v916 = vmul.f32 %v914, 0.5
        %v917 = vadd.f32 %v915, 0.5
        %v918 = vadd.f32 %v916, 0.5
        %v919 = vmul.f32 %v904, 0.5
        %v920 = vmul.f32 %v908, 0.5
        %v921 = vtanh.pop %v919
        %v922 = vtanh.pop %v920
        %v923 = vmul.f32 %v921, 0.5
        %v924 = vmul.f32 %v922, 0.5
        %v925 = vadd.f32 %v923, 0.5
        %v926 = vadd.f32 %v924, 0.5
        %v927 = vmul.f32 %v905, 0.5
        %v928 = vmul.f32 %v909, 0.5
        %v929 = vtanh.pop %v927
        %v930 = vtanh.pop %v928
        %v931 = vmul.f32 %v929, 0.5
        %v932 = vmul.f32 %v930, 0.5
        %v933 = vadd.f32 %v931, 0.5
        %v934 = vadd.f32 %v932, 0.5
        %v935 = vtanh.pop %v906
        %v936 = vtanh.pop %v910
        %v937 = vld [vmem:[#allocation3] sm:$0xff]
        %v938 = vld [vmem:[#allocation3 + $0x8] sm:$0xff]
        %v939 = vmul.f32 %v933, %v937
        %v940 = vmul.f32 %v934, %v938
        %v941 = vmul.f32 %v917, %v935
        %v942 = vmul.f32 %v918, %v936
        %v943 = vadd.f32 %v939, %v941
        %v944 = vadd.f32 %v940, %v942
        %v945 = vtanh.pop %v943
        %v946 = vtanh.pop %v944
        %v947 = vmul.f32 %v925, %v945
        %v948 = vmul.f32 %v926, %v946
        %949 = vst [vmem:[#allocation3] sm:$0xff] %v943
        %950 = vst [vmem:[#allocation3 + $0x8] sm:$0xff] %v944
        %v951 = vpack.c.bf16 %v948, %v947
        %v953 = vunpack.c.l.b16 %v951
        %v954 = vunpack.c.h.b16 %v951
        %v955 = vpack.c.b16 %v953, %v953
        %v956 = vpack.c.b16 %v954, %v954
        %959 = vst [vmem:[#allocation2] sm:$0xf] %v955
        %960 = vst [vmem:[#allocation2 + $0x4] sm:$0xf] %v956
        %961 = vst [vmem:[%s424] sm:$0xf] %v955
        %962 = vst [vmem:[%s424 + $0x4] sm:$0xf] %v956
        // Predicated region
        $region69: #{tpu_custom_call.1} parent=43 // pred_check
          %p963 = pneg %p438
        $region70: #{tpu_custom_call.1} parent=43 // pred_check_branch
          %965 = sbr.rel (%p963) target = $region72
        $region71: #{tpu_custom_call.1} parent=43 // pred_region
          %966 = vst [vmem:[%s431] sm:$0xff] %v943
          %967 = vst [vmem:[%s431 + $0x8] sm:$0xff] %v944
        $region72: #{tpu_custom_call.1} parent=43 // pred_fallthru
          _
        %s968 = sand.u32 %s197, 1
        %s969 = scalar_lea.sflag [#allocation6], %s968
        %s970 = sand.u32 %s197, 1
        %s971 = smul.addr %s970, 8
        %s972 = scalar_lea.vmem [#allocation13], %s971
        %s973 = sand.u32 %s223, 1
        %s974 = scalar_lea.sflag [#allocation15], %s973
        %s975 = sand.u32 %s223, 1
        %s976 = smul.addr %s975, 16
        %s977 = scalar_lea.vmem [#allocation14], %s976
        // Predicated region
        $region73: #{tpu_custom_call.1} parent=43 // pred_check
          %p978 = pneg %p207
        $region74: #{tpu_custom_call.1} parent=43 // pred_check_branch
          %980 = sbr.rel (%p978) target = $region76
        $region75: #{tpu_custom_call.1} parent=43 // pred_region
          %s981 = smul.u32 2, %s36
          %s983 = ssub.s32 128, 128
          %984 = vsyncadd %s969, %s983
          %s985 = smul.addr %s37, 4
          %s986 = sadd.s32 %s981, %s985
          %s987 = smul.addr %s986, 64
          %s988 = scalar_lea.hbm %s6, %s987
          %s989 = sshll.u32 %s972, 4
          %s990 = int_to_ptr.vmem [resolvable:$true] %s989
          %995 = dma.vmem_to_hbm [thread:$0]  %s990, 128, %s988, %s969, 64, 64, 4
        $region76: #{tpu_custom_call.1} parent=43 // pred_fallthru
          _
        // Predicated region
        $region77: #{tpu_custom_call.1} parent=43 // pred_check
          %p996 = pneg %p233
        $region78: #{tpu_custom_call.1} parent=43 // pred_check_branch
          %998 = sbr.rel (%p996) target = $region80
        $region79: #{tpu_custom_call.1} parent=43 // pred_region
          %s999 = smul.u32 2, %s36
          %s1001 = ssub.s32 256, 256
          %1002 = vsyncadd %s974, %s1001
          %s1003 = smul.addr %s999, 128
          %s1004 = scalar_lea.hbm %s7, %s1003
          %s1005 = sshll.u32 %s977, 4
          %s1006 = int_to_ptr.vmem [resolvable:$true] %s1005
          %1011 = dma.vmem_to_hbm [thread:$0]  %s1006, 256, %s1004, %s974, 128, 128, 8
        $region80: #{tpu_custom_call.1} parent=43 // pred_fallthru
          _
      $region44: #{tpu_custom_call.1} parent=5 // pred_fallthru
        _
      %p1012 = scmp.le.s32.totalorder 2, %s27
      // Predicated region
      $region81: #{tpu_custom_call.1} parent=5 // pred_check
        %p1013 = pneg %p1012
      $region82: #{tpu_custom_call.1} parent=5 // pred_check_branch
        %1015 = sbr.rel (%p1013) target = $region84
      $region83: #{tpu_custom_call.1} parent=5 // pred_region
        %s1016 = ssub.s32 %s27, 2
        // Predicated region
        $region85: #{tpu_custom_call.1} parent=83 // pred_check
          %p1017 = pneg %p213
        $region86: #{tpu_custom_call.1} parent=83 // pred_check_branch
          %1019 = sbr.rel (%p1017) target = $region88
        $region87: #{tpu_custom_call.1} parent=83 // pred_region
          %s1020 = sand.u32 %s198, 1
          %s1021 = scalar_lea.sflag [#allocation6], %s1020
          %s1022 = sand.u32 %s198, 1
          %s1023 = smul.addr %s1022, 8
          %s1024 = scalar_lea.vmem [#allocation13], %s1023
          %1025 = dma.done %s1021, 128
        $region88: #{tpu_custom_call.1} parent=83 // pred_fallthru
          _
        // Predicated region
        $region89: #{tpu_custom_call.1} parent=83 // pred_check
          %p1026 = pneg %p239
        $region90: #{tpu_custom_call.1} parent=83 // pred_check_branch
          %1028 = sbr.rel (%p1026) target = $region92
        $region91: #{tpu_custom_call.1} parent=83 // pred_region
          %s1029 = sand.u32 %s224, 1
          %s1030 = scalar_lea.sflag [#allocation15], %s1029
          %s1031 = sand.u32 %s224, 1
          %s1032 = smul.addr %s1031, 16
          %s1033 = scalar_lea.vmem [#allocation14], %s1032
          %1034 = dma.done %s1030, 256
        $region92: #{tpu_custom_call.1} parent=83 // pred_fallthru
          _
      $region84: #{tpu_custom_call.1} parent=5 // pred_fallthru
        _
    $region6: #{tpu_custom_call.1} parent=1 // loop_footer
      %s31 = sadd.s32 1, %s27
    $region7: #{tpu_custom_call.1} parent=1 // loop_footer_branch
      %26 = sbr.rel target = $region3
    $region8: #{tpu_custom_call.1} parent=1 // loop_exit
      _
    %1035 = vsyncpa [#allocation5], 1
    %s1036 = scalar_lea.sflag [#allocation5], 1
    %1037 = vsyncpa %s1036, 1
    %1038 = vsyncpa [#allocation8], 1
    %s1039 = scalar_lea.sflag [#allocation8], 1
    %1040 = vsyncpa %s1039, 1
    %1041 = vsyncpa [#allocation11], 1
    %1042 = vsyncpa [#allocation6], 1
    %s1043 = scalar_lea.sflag [#allocation6], 1
    %1044 = vsyncpa %s1043, 1
    %1045 = vsyncpa [#allocation15], 1
    %s1046 = scalar_lea.sflag [#allocation15], 1
    %1047 = vsyncpa %s1046, 1

// kernel: tpu_custom_call.1
$region0: #{tpu_custom_call.1}
  #allocation0 [shape = 'u32[]', space=smem, size = 0x4, offset = 0x4, fixed_abs, tag = 'smem constant byte address 0x4 - core index']
  #allocation1 [shape = 'u32[144,128]{1,0:T(1,128)}', space=vmem, size = 0x12000, scoped, tag = 'internal scratch']
  #allocation2 [shape = 'bf16[16,128]{1,0:T(8,128)(2,1)}', space=vmem, size = 0x1000, scoped, tag = 'scratch operand']
  #allocation3 [shape = 'f32[16,128]{1,0:T(8,128)}', space=vmem, size = 0x2000, scoped, tag = 'scratch operand']
  %s0 = inlined_call_operand.hbm [shape: bf16[1,32,32], index: 0, kind: input, shape index: {}]
  %s1 = inlined_call_operand.hbm [shape: bf16[32,128], index: 1, kind: input, shape index: {}]
  %s2 = inlined_call_operand.hbm [shape: f32[32,128], index: 2, kind: input, shape index: {}]
  %s3 = inlined_call_operand.hbm [shape: bf16[32,512], index: 3, kind: input, shape index: {}]
  %s4 = inlined_call_operand.hbm [shape: bf16[128,512], index: 4, kind: input, shape index: {}]
  %s5 = inlined_call_operand.vmem [shape: f32[1,512], index: 5, kind: input, shape index: {}]
  %s6 = inlined_call_operand.hbm [shape: bf16[1,32,128], index: 6, kind: output, shape index: {0}]
  %s7 = inlined_call_operand.hbm [shape: f32[32,128], index: 7, kind: output, shape index: {1}]
  %8 = xla_tuple %s6, %s7
  %s9 = sld [smem:[#allocation0]]
  $region93: #{tpu_custom_call.1} parent=0
    _
  %s11 = ssub.s32 1, %s9
  %s12 = scalar_select 0, %s11, %s9
  $region1: #{tpu_custom_call.1} parent=0
    #allocation4 [shape = 'u8[8192]{0}', space=vmem, size = 0x2000, scoped, tag = 'input window, operand 0']
    #allocation5 [shape = 's32[2]{0}', space=sflag, size = 0x8, scoped, tag = 'scoped memory for tpu_custom_call.1']
    #allocation6 [shape = 's32[2]{0}', space=sflag, size = 0x8, scoped, tag = 'scoped memory for tpu_custom_call.1']
    #allocation7 [shape = 'u8[8192]{0}', space=vmem, size = 0x2000, scoped, tag = 'input window, operand 1']
    #allocation8 [shape = 's32[2]{0}', space=sflag, size = 0x8, scoped, tag = 'scoped memory for tpu_custom_call.1']
    #allocation9 [shape = 'u8[16384]{0}', space=vmem, size = 0x4000, scoped, tag = 'input window, operand 2']
    #allocation10 [shape = 'u8[32768]{0}', space=vmem, size = 0x8000, scoped, tag = 'input window, operand 3, single buffered']
    #allocation11 [shape = 's32[1]{0}', space=sflag, size = 0x4, scoped, tag = 'scoped memory for tpu_custom_call.1']
    #allocation12 [shape = 'u8[131072]{0}', space=vmem, size = 0x20000, scoped, tag = 'input window, operand 4, single buffered']
    #allocation13 [shape = 'u8[8192]{0}', space=vmem, size = 0x2000, scoped, tag = 'output window, operand 0']
    #allocation14 [shape = 'u8[16384]{0}', space=vmem, size = 0x4000, scoped, tag = 'output window, operand 1']
    #allocation15 [shape = 's32[2]{0}', space=sflag, size = 0x8, scoped, tag = 'scoped memory for tpu_custom_call.1']
    %13 = vsyncpa [#allocation5], 0
    %s14 = scalar_lea.sflag [#allocation5], 1
    %15 = vsyncpa %s14, 0
    %16 = vsyncpa [#allocation8], 0
    %s17 = scalar_lea.sflag [#allocation8], 1
    %18 = vsyncpa %s17, 0
    %19 = vsyncpa [#allocation11], 0
    %20 = vsyncpa [#allocation6], 0
    %s21 = scalar_lea.sflag [#allocation6], 1
    %22 = vsyncpa %s21, 0
    %23 = vsyncpa [#allocation15], 0
    %s24 = scalar_lea.sflag [#allocation15], 1
    %25 = vsyncpa %s24, 0
    loop: start=0, step=1, limit=4
    $region2: #{tpu_custom_call.1} parent=1 // loop_pre_header
      _
    $region3: #{tpu_custom_call.1} parent=1 // loop_header
      %s27 = sphi 0, %s31
      %p28 = scmp.ge.s32.totalorder %s27, 4
      %s34 = sphi 0, %s46
      %s35 = sphi 0, %s42
      %s36 = sphi 0, %s34
      %s37 = sphi 0, %s35
      %s38 = sphi 0, %s36
      %s39 = sphi 0, %s37
      %s51 = sphi 0, %s53
      %s54 = sphi 0, %s51
      %s55 = sphi 0, %s54
      %s71 = sphi 0, %s55
      %s77 = sphi 0, %s79
      %s80 = sphi 0, %s77
      %s81 = sphi 0, %s80
      %s97 = sphi 0, %s81
      %s103 = sphi 0, %s105
      %s106 = sphi 0, %s103
      %s107 = sphi 0, %s106
      %s123 = sphi 0, %s107
      %s127 = sphi 0, %s127
      %s129 = sphi 0, %s127
      %s130 = sphi 0, %s129
      %s144 = sphi 0, %s130
      %s148 = sphi 0, %s148
      %s150 = sphi 0, %s148
      %s151 = sphi 0, %s150
      %s165 = sphi 0, %s151
      %s169 = sphi 0, %s169
      %s171 = sphi 0, %s169
      %s172 = sphi 0, %s171
      %s186 = sphi 0, %s172
      %s194 = sphi 0, %s196
      %s197 = sphi 0, %s194
      %s198 = sphi 0, %s197
      %s214 = sphi 0, %s198
      %s220 = sphi 0, %s222
      %s223 = sphi 0, %s220
      %s224 = sphi 0, %s223
      %s240 = sphi 0, %s224
    $region4: #{tpu_custom_call.1} parent=1 // loop_header_branch
      %30 = sbr.rel (%p28) target = $region8
    $region5: #{tpu_custom_call.1} parent=1 // loop_body
      %s32 = ssub.s32 %s27, 1
      %s33 = ssub.s32 %s27, 2
      %s40 = sadd.s32 1, %s35
      %p41 = scmp.ge.s32.totalorder %s40, 1
      %s42 = scalar_select %p41, 0, %s40
      %s43 = sadd.s32 1, %s34
      %s44 = scalar_select %p41, %s43, %s34
      %p45 = scmp.ge.s32.totalorder %s44, 2
      %s46 = scalar_select %p45, 0, %s44
      %s47 = ssub.s32 %s35, %s42
      %s48 = ssub.s32 %s34, %s46
      %s49 = sor.u32 %s47, %s48
      %p50 = scmp.eq.s32.totalorder %s49, 0
      %s52 = sadd.s32 %s51, 1
      %s53 = scalar_select %p50, %s51, %s52
      %p56 = pneg %p50
      %p57 = scmp.eq.s32.totalorder %s27, 1
      %p58 = por %p56, %p57
      %p59 = scmp.ne.s32.totalorder %s51, %s54
      %p60 = scmp.eq.s32.totalorder %s27, 0
      %p61 = por %p59, %p60
      %p62 = scmp.ne.s32.totalorder %s51, %s54
      %p63 = scmp.eq.s32.totalorder %s32, 1
      %p64 = por %p62, %p63
      %p65 = scmp.ne.s32.totalorder %s54, %s55
      %p66 = scmp.eq.s32.totalorder %s32, 0
      %p67 = por %p65, %p66
      %p68 = scmp.ne.s32.totalorder %s54, %s55
      %p69 = scmp.eq.s32.totalorder %s33, 1
      %p70 = por %p68, %p69
      %p72 = scmp.ne.s32.totalorder %s55, %s71
      %p73 = scmp.eq.s32.totalorder %s33, 0
      %p74 = por %p72, %p73
      %s75 = ssub.s32 %s34, %s46
      %p76 = scmp.eq.s32.totalorder %s75, 0
      %s78 = sadd.s32 %s77, 1
      %s79 = scalar_select %p76, %s77, %s78
      %p82 = pneg %p76
      %p83 = scmp.eq.s32.totalorder %s27, 1
      %p84 = por %p82, %p83
      %p85 = scmp.ne.s32.totalorder %s77, %s80
      %p86 = scmp.eq.s32.totalorder %s27, 0
      %p87 = por %p85, %p86
      %p88 = scmp.ne.s32.totalorder %s77, %s80
      %p89 = scmp.eq.s32.totalorder %s32, 1
      %p90 = por %p88, %p89
      %p91 = scmp.ne.s32.totalorder %s80, %s81
      %p92 = scmp.eq.s32.totalorder %s32, 0
      %p93 = por %p91, %p92
      %p94 = scmp.ne.s32.totalorder %s80, %s81
      %p95 = scmp.eq.s32.totalorder %s33, 1
      %p96 = por %p94, %p95
      %p98 = scmp.ne.s32.totalorder %s81, %s97
      %p99 = scmp.eq.s32.totalorder %s33, 0
      %p100 = por %p98, %p99
      %s101 = ssub.s32 %s34, %s46
      %p102 = scmp.eq.s32.totalorder %s101, 0
      %s104 = sadd.s32 %s103, 1
      %s105 = scalar_select %p102, %s103, %s104
      %p108 = pneg %p102
      %p109 = scmp.eq.s32.totalorder %s27, 1
      %p110 = por %p108, %p109
      %p111 = scmp.ne.s32.totalorder %s103, %s106
      %p112 = scmp.eq.s32.totalorder %s27, 0
      %p113 = por %p111, %p112
      %p114 = scmp.ne.s32.totalorder %s103, %s106
      %p115 = scmp.eq.s32.totalorder %s32, 1
      %p116 = por %p114, %p115
      %p117 = scmp.ne.s32.totalorder %s106, %s107
      %p118 = scmp.eq.s32.totalorder %s32, 0
      %p119 = por %p117, %p118
      %p120 = scmp.ne.s32.totalorder %s106, %s107
      %p121 = scmp.eq.s32.totalorder %s33, 1
      %p122 = por %p120, %p121
      %p124 = scmp.ne.s32.totalorder %s107, %s123
      %p125 = scmp.eq.s32.totalorder %s33, 0
      %p126 = por %p124, %p125
      %s128 = sadd.s32 %s127, 1
      %p131 = scmp.eq.s32.totalorder %s27, 1
      %p132 = scmp.ne.s32.totalorder %s127, %s129
      %p133 = scmp.eq.s32.totalorder %s27, 0
      %p134 = por %p132, %p133
      %p135 = scmp.ne.s32.totalorder %s127, %s129
      %p136 = scmp.eq.s32.totalorder %s32, 1
      %p137 = por %p135, %p136
      %p138 = scmp.ne.s32.totalorder %s129, %s130
      %p139 = scmp.eq.s32.totalorder %s32, 0
      %p140 = por %p138, %p139
      %p141 = scmp.ne.s32.totalorder %s129, %s130
      %p142 = scmp.eq.s32.totalorder %s33, 1
      %p143 = por %p141, %p142
      %p145 = scmp.ne.s32.totalorder %s130, %s144
      %p146 = scmp.eq.s32.totalorder %s33, 0
      %p147 = por %p145, %p146
      %s149 = sadd.s32 %s148, 1
      %p152 = scmp.eq.s32.totalorder %s27, 1
      %p153 = scmp.ne.s32.totalorder %s148, %s150
      %p154 = scmp.eq.s32.totalorder %s27, 0
      %p155 = por %p153, %p154
      %p156 = scmp.ne.s32.totalorder %s148, %s150
      %p157 = scmp.eq.s32.totalorder %s32, 1
      %p158 = por %p156, %p157
      %p159 = scmp.ne.s32.totalorder %s150, %s151
      %p160 = scmp.eq.s32.totalorder %s32, 0
      %p161 = por %p159, %p160
      %p162 = scmp.ne.s32.totalorder %s150, %s151
      %p163 = scmp.eq.s32.totalorder %s33, 1
      %p164 = por %p162, %p163
      %p166 = scmp.ne.s32.totalorder %s151, %s165
      %p167 = scmp.eq.s32.totalorder %s33, 0
      %p168 = por %p166, %p167
      %s170 = sadd.s32 %s169, 1
      %p173 = scmp.eq.s32.totalorder %s27, 1
      %p174 = scmp.ne.s32.totalorder %s169, %s171
      %p175 = scmp.eq.s32.totalorder %s27, 0
      %p176 = por %p174, %p175
      %p177 = scmp.ne.s32.totalorder %s169, %s171
      %p178 = scmp.eq.s32.totalorder %s32, 1
      %p179 = por %p177, %p178
      %p180 = scmp.ne.s32.totalorder %s171, %s172
      %p181 = scmp.eq.s32.totalorder %s32, 0
      %p182 = por %p180, %p181
      %p183 = scmp.ne.s32.totalorder %s171, %s172
      %p184 = scmp.eq.s32.totalorder %s33, 1
      %p185 = por %p183, %p184
      %p187 = scmp.ne.s32.totalorder %s172, %s186
      %p188 = scmp.eq.s32.totalorder %s33, 0
      %p189 = por %p187, %p188
      %s190 = ssub.s32 %s35, %s42
      %s191 = ssub.s32 %s34, %s46
      %s192 = sor.u32 %s190, %s191
      %p193 = scmp.eq.s32.totalorder %s192, 0
      %s195 = sadd.s32 %s194, 1
      %s196 = scalar_select %p193, %s194, %s195
      %p199 = pneg %p193
      %p200 = scmp.eq.s32.totalorder %s27, 1
      %p201 = por %p199, %p200
      %p202 = scmp.ne.s32.totalorder %s194, %s197
      %p203 = scmp.eq.s32.totalorder %s27, 0
      %p204 = por %p202, %p203
      %p205 = scmp.ne.s32.totalorder %s194, %s197
      %p206 = scmp.eq.s32.totalorder %s32, 1
      %p207 = por %p205, %p206
      %p208 = scmp.ne.s32.totalorder %s197, %s198
      %p209 = scmp.eq.s32.totalorder %s32, 0
      %p210 = por %p208, %p209
      %p211 = scmp.ne.s32.totalorder %s197, %s198
      %p212 = scmp.eq.s32.totalorder %s33, 1
      %p213 = por %p211, %p212
      %p215 = scmp.ne.s32.totalorder %s198, %s214
      %p216 = scmp.eq.s32.totalorder %s33, 0
      %p217 = por %p215, %p216
      %s218 = ssub.s32 %s34, %s46
      %p219 = scmp.eq.s32.totalorder %s218, 0
      %s221 = sadd.s32 %s220, 1
      %s222 = scalar_select %p219, %s220, %s221
      %p225 = pneg %p219
      %p226 = scmp.eq.s32.totalorder %s27, 1
      %p227 = por %p225, %p226
      %p228 = scmp.ne.s32.totalorder %s220, %s223
      %p229 = scmp.eq.s32.totalorder %s27, 0
      %p230 = por %p228, %p229
      %p231 = scmp.ne.s32.totalorder %s220, %s223
      %p232 = scmp.eq.s32.totalorder %s32, 1
      %p233 = por %p231, %p232
      %p234 = scmp.ne.s32.totalorder %s223, %s224
      %p235 = scmp.eq.s32.totalorder %s32, 0
      %p236 = por %p234, %p235
      %p237 = scmp.ne.s32.totalorder %s223, %s224
      %p238 = scmp.eq.s32.totalorder %s33, 1
      %p239 = por %p237, %p238
      %p241 = scmp.ne.s32.totalorder %s224, %s240
      %p242 = scmp.eq.s32.totalorder %s33, 0
      %p243 = por %p241, %p242
      %p244 = scmp.le.s32.totalorder 1, %s27
      %p245 = scmp.lt.s32.totalorder %s27, 3
      %p246 = pnand %p244, %p245
      %p247 = pneg %p246
      // Predicated region
      $region9: #{tpu_custom_call.1} parent=5 // pred_check
        _
      $region10: #{tpu_custom_call.1} parent=5 // pred_check_branch
        %249 = sbr.rel (%p246) target = $region12
      $region11: #{tpu_custom_call.1} parent=5 // pred_region
        %s250 = ssub.s32 %s27, 1
        // Predicated region
        $region13: #{tpu_custom_call.1} parent=11 // pred_check
          %p251 = pneg %p140
        $region14: #{tpu_custom_call.1} parent=11 // pred_check_branch
          %253 = sbr.rel (%p251) target = $region16
        $region15: #{tpu_custom_call.1} parent=11 // pred_region
          %s255 = ssub.s32 1024, 1024
          %256 = vsyncadd [#allocation11], %s255
          %s257 = sshll.u32 [#allocation10], 4
          %s258 = int_to_ptr.vmem [resolvable:$true] %s257
          %263 = dma.hbm_to_vmem [thread:$0]  %s3, 1024, %s258, [#allocation11], 256, 256, 16
        $region16: #{tpu_custom_call.1} parent=11 // pred_fallthru
          _
        // Predicated region
        $region17: #{tpu_custom_call.1} parent=11 // pred_check
          %p264 = pneg %p161
        $region18: #{tpu_custom_call.1} parent=11 // pred_check_branch
          %266 = sbr.rel (%p264) target = $region20
        $region19: #{tpu_custom_call.1} parent=11 // pred_region
          %s268 = ssub.s32 4096, 4096
          %269 = vsyncadd [#allocation11], %s268
          %s270 = sshll.u32 [#allocation12], 4
          %s271 = int_to_ptr.vmem [resolvable:$true] %s270
          %276 = dma.hbm_to_vmem [thread:$0]  %s4, 4096, %s271, [#allocation11], 256, 256, 16
        $region20: #{tpu_custom_call.1} parent=11 // pred_fallthru
          _
        // Predicated region
        $region21: #{tpu_custom_call.1} parent=11 // pred_check
          %p277 = pneg %p182
        $region22: #{tpu_custom_call.1} parent=11 // pred_check_branch
          %279 = sbr.rel (%p277) target = $region24
        $region23: #{tpu_custom_call.1} parent=11 // pred_region
          _
        $region24: #{tpu_custom_call.1} parent=11 // pred_fallthru
          _
      $region12: #{tpu_custom_call.1} parent=5 // pred_fallthru
        _
      %p280 = scmp.lt.s32.totalorder %s27, 2
      // Predicated region
      $region25: #{tpu_custom_call.1} parent=5 // pred_check
        %p281 = pneg %p280
      $region26: #{tpu_custom_call.1} parent=5 // pred_check_branch
        %283 = sbr.rel (%p281) target = $region28
      $region27: #{tpu_custom_call.1} parent=5 // pred_region
        // Predicated region
        $region29: #{tpu_custom_call.1} parent=27 // pred_check
          %p284 = pneg %p61
        $region30: #{tpu_custom_call.1} parent=27 // pred_check_branch
          %286 = sbr.rel (%p284) target = $region32
        $region31: #{tpu_custom_call.1} parent=27 // pred_region
          %s287 = sand.u32 %s51, 1
          %s288 = scalar_lea.sflag [#allocation5], %s287
          %s289 = sand.u32 %s51, 1
          %s290 = smul.addr %s289, 8
          %s291 = scalar_lea.vmem [#allocation4], %s290
          %s292 = smul.u32 2, %s34
          %s294 = ssub.s32 128, 128
          %295 = vsyncadd %s288, %s294
          %s296 = smul.addr %s35, 4
          %s297 = sadd.s32 %s292, %s296
          %s298 = smul.addr %s297, 64
          %s299 = scalar_lea.hbm %s0, %s298
          %s300 = sshll.u32 %s291, 4
          %s301 = int_to_ptr.vmem [resolvable:$true] %s300
          %306 = dma.hbm_to_vmem [thread:$0]  %s299, 128, %s301, %s288, 64, 64, 4
        $region32: #{tpu_custom_call.1} parent=27 // pred_fallthru
          _
        // Predicated region
        $region33: #{tpu_custom_call.1} parent=27 // pred_check
          %p307 = pneg %p87
        $region34: #{tpu_custom_call.1} parent=27 // pred_check_branch
          %309 = sbr.rel (%p307) target = $region36
        $region35: #{tpu_custom_call.1} parent=27 // pred_region
          %s310 = sand.u32 %s27, 1
          %s311 = scalar_lea.sflag [#allocation8], %s310
          %s312 = sand.u32 %s77, 1
          %s313 = smul.addr %s312, 8
          %s314 = scalar_lea.vmem [#allocation7], %s313
          %s315 = smul.u32 2, %s34
          %s317 = ssub.s32 128, 128
          %318 = vsyncadd %s311, %s317
          %s319 = smul.addr %s315, 64
          %s320 = scalar_lea.hbm %s1, %s319
          %s321 = sshll.u32 %s314, 4
          %s322 = int_to_ptr.vmem [resolvable:$true] %s321
          %327 = dma.hbm_to_vmem [thread:$0]  %s320, 128, %s322, %s311, 64, 64, 4
        $region36: #{tpu_custom_call.1} parent=27 // pred_fallthru
          _
        // Predicated region
        $region37: #{tpu_custom_call.1} parent=27 // pred_check
          %p328 = pneg %p113
        $region38: #{tpu_custom_call.1} parent=27 // pred_check_branch
          %330 = sbr.rel (%p328) target = $region40
        $region39: #{tpu_custom_call.1} parent=27 // pred_region
          %s331 = sand.u32 %s27, 1
          %s332 = scalar_lea.sflag [#allocation8], %s331
          %s333 = sand.u32 %s103, 1
          %s334 = smul.addr %s333, 16
          %s335 = scalar_lea.vmem [#allocation9], %s334
          %s336 = smul.u32 2, %s34
          %s338 = ssub.s32 256, 256
          %339 = vsyncadd %s332, %s338
          %s340 = smul.addr %s336, 128
          %s341 = scalar_lea.hbm %s2, %s340
          %s342 = sshll.u32 %s335, 4
          %s343 = int_to_ptr.vmem [resolvable:$true] %s342
          %348 = dma.hbm_to_vmem [thread:$0]  %s341, 256, %s343, %s332, 128, 128, 8
        $region40: #{tpu_custom_call.1} parent=27 // pred_fallthru
          _
      $region28: #{tpu_custom_call.1} parent=5 // pred_fallthru
        _
      %p349 = scmp.le.s32.totalorder 1, %s27
      %p350 = scmp.lt.s32.totalorder %s27, 3
      %p351 = pnand %p349, %p350
      %p352 = pneg %p351
      // Predicated region
      $region41: #{tpu_custom_call.1} parent=5 // pred_check
        _
      $region42: #{tpu_custom_call.1} parent=5 // pred_check_branch
        %354 = sbr.rel (%p351) target = $region44
      $region43: #{tpu_custom_call.1} parent=5 // pred_region
        %s355 = ssub.s32 %s27, 1
        %s356 = sand.u32 %s54, 1
        %s357 = scalar_lea.sflag [#allocation5], %s356
        %s358 = sand.u32 %s54, 1
        %s359 = smul.addr %s358, 8
        %s360 = scalar_lea.vmem [#allocation4], %s359
        // Predicated region
        $region45: #{tpu_custom_call.1} parent=43 // pred_check
          %p361 = pneg %p67
        $region46: #{tpu_custom_call.1} parent=43 // pred_check_branch
          %363 = sbr.rel (%p361) target = $region48
        $region47: #{tpu_custom_call.1} parent=43 // pred_region
          %364 = dma.done %s357, 128
        $region48: #{tpu_custom_call.1} parent=43 // pred_fallthru
          _
        %s365 = sand.u32 %s32, 1
        %s366 = scalar_lea.sflag [#allocation8], %s365
        %s367 = sand.u32 %s80, 1
        %s368 = smul.addr %s367, 8
        %s369 = scalar_lea.vmem [#allocation7], %s368
        // Predicated region
        $region49: #{tpu_custom_call.1} parent=43 // pred_check
          %p370 = pneg %p93
        $region50: #{tpu_custom_call.1} parent=43 // pred_check_branch
          %372 = sbr.rel (%p370) target = $region52
        $region51: #{tpu_custom_call.1} parent=43 // pred_region
          %373 = dma.done %s366, 128
        $region52: #{tpu_custom_call.1} parent=43 // pred_fallthru
          _
        %s374 = sand.u32 %s32, 1
        %s375 = scalar_lea.sflag [#allocation8], %s374
        %s376 = sand.u32 %s106, 1
        %s377 = smul.addr %s376, 16
        %s378 = scalar_lea.vmem [#allocation9], %s377
        // Predicated region
        $region53: #{tpu_custom_call.1} parent=43 // pred_check
          %p379 = pneg %p119
        $region54: #{tpu_custom_call.1} parent=43 // pred_check_branch
          %381 = sbr.rel (%p379) target = $region56
        $region55: #{tpu_custom_call.1} parent=43 // pred_region
          %382 = dma.done %s375, 256
        $region56: #{tpu_custom_call.1} parent=43 // pred_fallthru
          _
        // Predicated region
        $region57: #{tpu_custom_call.1} parent=43 // pred_check
          %p383 = pneg %p140
        $region58: #{tpu_custom_call.1} parent=43 // pred_check_branch
          %385 = sbr.rel (%p383) target = $region60
        $region59: #{tpu_custom_call.1} parent=43 // pred_region
          %386 = dma.done [#allocation11], 1024
        $region60: #{tpu_custom_call.1} parent=43 // pred_fallthru
          _
        // Predicated region
        $region61: #{tpu_custom_call.1} parent=43 // pred_check
          %p387 = pneg %p161
        $region62: #{tpu_custom_call.1} parent=43 // pred_check_branch
          %389 = sbr.rel (%p387) target = $region64
        $region63: #{tpu_custom_call.1} parent=43 // pred_region
          %390 = dma.done [#allocation11], 4096
        $region64: #{tpu_custom_call.1} parent=43 // pred_fallthru
          _
        %s391 = sand.u32 %s54, 1
        %s392 = scalar_lea.sflag [#allocation5], %s391
        %s393 = sand.u32 %s54, 1
        %s394 = smul.addr %s393, 8
        %s395 = scalar_lea.vmem [#allocation4], %s394
        %p396 = pneg %p67
        %p397 = pneg %p64
        %s398 = sand.u32 %s32, 1
        %s399 = scalar_lea.sflag [#allocation8], %s398
        %s400 = sand.u32 %s80, 1
        %s401 = smul.addr %s400, 8
        %s402 = scalar_lea.vmem [#allocation7], %s401
        %p403 = pneg %p93
        %p404 = pneg %p90
        %s405 = sand.u32 %s32, 1
        %s406 = scalar_lea.sflag [#allocation8], %s405
        %s407 = sand.u32 %s106, 1
        %s408 = smul.addr %s407, 16
        %s409 = scalar_lea.vmem [#allocation9], %s408
        %p410 = pneg %p119
        %p411 = pneg %p116
        %p412 = pneg %p140
        %p413 = pneg %p137
        %p414 = pneg %p161
        %p415 = pneg %p158
        %p416 = pneg %p182
        %p417 = pneg %p179
        %p418 = pneg %p210
        %p419 = pneg %p207
        %s420 = sand.u32 %s197, 1
        %s421 = scalar_lea.sflag [#allocation6], %s420
        %s422 = sand.u32 %s197, 1
        %s423 = smul.addr %s422, 8
        %s424 = scalar_lea.vmem [#allocation13], %s423
        %p425 = pneg %p236
        %p426 = pneg %p233
        %s427 = sand.u32 %s223, 1
        %s428 = scalar_lea.sflag [#allocation15], %s427
        %s429 = sand.u32 %s223, 1
        %s430 = smul.addr %s429, 16
        %s431 = scalar_lea.vmem [#allocation14], %s430
        %s432 = smul.u32 2, %s36
        %s433 = smul.u32 2, %s36
        %s434 = smul.u32 2, %s36
        %s435 = smul.u32 2, %s36
        %s436 = smul.u32 2, %s36
        %p438 = scmp.eq.s32.totalorder %s37, 0
        // Predicated region
        $region65: #{tpu_custom_call.1} parent=43 // pred_check
          %p439 = pneg %p438
        $region66: #{tpu_custom_call.1} parent=43 // pred_check_branch
          %441 = sbr.rel (%p439) target = $region68
        $region67: #{tpu_custom_call.1} parent=43 // pred_region
          %v442 = vld [vmem:[%s369] sm:$0xf]
          %v443 = vld [vmem:[%s369 + $0x4] sm:$0xf]
          %444 = vst [vmem:[#allocation2] sm:$0xf] %v442
          %445 = vst [vmem:[#allocation2 + $0x4] sm:$0xf] %v443
          %v446 = vld [vmem:[%s378] sm:$0xff]
          %v447 = vld [vmem:[%s378 + $0x8] sm:$0xff]
          %448 = vst [vmem:[#allocation3] sm:$0xff] %v446
          %449 = vst [vmem:[#allocation3 + $0x8] sm:$0xff] %v447
        $region68: #{tpu_custom_call.1} parent=43 // pred_fallthru
          _
        %v450 = vld [vmem:[%s360] sm:$0xf]
        %v451 = vld [vmem:[%s360 + $0x4] sm:$0xf]
        %v452 = vld [vmem:[#allocation10] sm:$0xff]
        %v453 = vld [vmem:[#allocation10 + $0x8] sm:$0xff]
        %v454 = vld [vmem:[#allocation10 + $0x10] sm:$0xff]
        %v455 = vld [vmem:[#allocation10 + $0x18] sm:$0xff]
        %v456 = vld [vmem:[#allocation10 + $0x20] sm:$0xff]
        %v457 = vld [vmem:[#allocation10 + $0x28] sm:$0xff]
        %v458 = vld [vmem:[#allocation10 + $0x30] sm:$0xff]
        %v459 = vld [vmem:[#allocation10 + $0x38] sm:$0xff]
        %v460 = vld [vmem:[#allocation2] sm:$0xf]
        %v461 = vld [vmem:[#allocation2 + $0x4] sm:$0xf]
        %v462 = vld [vmem:[#allocation12] sm:$0xff]
        %v463 = vld [vmem:[#allocation12 + $0x8] sm:$0xff]
        %v464 = vld [vmem:[#allocation12 + $0x10] sm:$0xff]
        %v465 = vld [vmem:[#allocation12 + $0x18] sm:$0xff]
        %v466 = vld [vmem:[#allocation12 + $0x20] sm:$0xff]
        %v467 = vld [vmem:[#allocation12 + $0x28] sm:$0xff]
        %v468 = vld [vmem:[#allocation12 + $0x30] sm:$0xff]
        %v469 = vld [vmem:[#allocation12 + $0x38] sm:$0xff]
        %v470 = vld [vmem:[#allocation12 + $0x40] sm:$0xff]
        %v471 = vld [vmem:[#allocation12 + $0x48] sm:$0xff]
        %v472 = vld [vmem:[#allocation12 + $0x50] sm:$0xff]
        %v473 = vld [vmem:[#allocation12 + $0x58] sm:$0xff]
        %v474 = vld [vmem:[#allocation12 + $0x60] sm:$0xff]
        %v475 = vld [vmem:[#allocation12 + $0x68] sm:$0xff]
        %v476 = vld [vmem:[#allocation12 + $0x70] sm:$0xff]
        %v477 = vld [vmem:[#allocation12 + $0x78] sm:$0xff]
        %v478 = vld [vmem:[#allocation12 + $0x80] sm:$0xff]
        %v479 = vld [vmem:[#allocation12 + $0x88] sm:$0xff]
        %v480 = vld [vmem:[#allocation12 + $0x90] sm:$0xff]
        %v481 = vld [vmem:[#allocation12 + $0x98] sm:$0xff]
        %v482 = vld [vmem:[#allocation12 + $0xa0] sm:$0xff]
        %v483 = vld [vmem:[#allocation12 + $0xa8] sm:$0xff]
        %v484 = vld [vmem:[#allocation12 + $0xb0] sm:$0xff]
        %v485 = vld [vmem:[#allocation12 + $0xb8] sm:$0xff]
        %v486 = vld [vmem:[#allocation12 + $0xc0] sm:$0xff]
        %v487 = vld [vmem:[#allocation12 + $0xc8] sm:$0xff]
        %v488 = vld [vmem:[#allocation12 + $0xd0] sm:$0xff]
        %v489 = vld [vmem:[#allocation12 + $0xd8] sm:$0xff]
        %v490 = vld [vmem:[#allocation12 + $0xe0] sm:$0xff]
        %v491 = vld [vmem:[#allocation12 + $0xe8] sm:$0xff]
        %v492 = vld [vmem:[#allocation12 + $0xf0] sm:$0xff]
        %v493 = vld [vmem:[#allocation12 + $0xf8] sm:$0xff]
        %v496 = vunpack.c.l.b16 %v460
        %v497 = vunpack.c.l.b16 %v461
        %v498 = vpack.c.b16 %v497, %v496
        %v532 = vunpack.c.l.b16 %v462
        %v533 = vunpack.c.h.b16 %v462
        %v534 = vunpack.c.l.b16 %v463
        %v535 = vunpack.c.h.b16 %v463
        %v536 = vunpack.c.l.b16 %v464
        %v537 = vunpack.c.h.b16 %v464
        %v538 = vunpack.c.l.b16 %v465
        %v539 = vunpack.c.h.b16 %v465
        %v540 = vunpack.c.l.b16 %v466
        %v541 = vunpack.c.h.b16 %v466
        %v542 = vunpack.c.l.b16 %v467
        %v543 = vunpack.c.h.b16 %v467
        %v544 = vunpack.c.l.b16 %v468
        %v545 = vunpack.c.h.b16 %v468
        %v546 = vunpack.c.l.b16 %v469
        %v547 = vunpack.c.h.b16 %v469
        %v548 = vunpack.c.l.b16 %v470
        %v549 = vunpack.c.h.b16 %v470
        %v550 = vunpack.c.l.b16 %v471
        %v551 = vunpack.c.h.b16 %v471
        %v552 = vunpack.c.l.b16 %v472
        %v553 = vunpack.c.h.b16 %v472
        %v554 = vunpack.c.l.b16 %v473
        %v555 = vunpack.c.h.b16 %v473
        %v556 = vunpack.c.l.b16 %v474
        %v557 = vunpack.c.h.b16 %v474
        %v558 = vunpack.c.l.b16 %v475
        %v559 = vunpack.c.h.b16 %v475
        %v560 = vunpack.c.l.b16 %v476
        %v561 = vunpack.c.h.b16 %v476
        %v562 = vunpack.c.l.b16 %v477
        %v563 = vunpack.c.h.b16 %v477
        %v564 = vunpack.c.l.b16 %v478
        %v565 = vunpack.c.h.b16 %v478
        %v566 = vunpack.c.l.b16 %v479
        %v567 = vunpack.c.h.b16 %v479
        %v568 = vunpack.c.l.b16 %v480
        %v569 = vunpack.c.h.b16 %v480
        %v570 = vunpack.c.l.b16 %v481
        %v571 = vunpack.c.h.b16 %v481
        %v572 = vunpack.c.l.b16 %v482
        %v573 = vunpack.c.h.b16 %v482
        %v574 = vunpack.c.l.b16 %v483
        %v575 = vunpack.c.h.b16 %v483
        %v576 = vunpack.c.l.b16 %v484
        %v577 = vunpack.c.h.b16 %v484
        %v578 = vunpack.c.l.b16 %v485
        %v579 = vunpack.c.h.b16 %v485
        %v580 = vunpack.c.l.b16 %v486
        %v581 = vunpack.c.h.b16 %v486
        %v582 = vunpack.c.l.b16 %v487
        %v583 = vunpack.c.h.b16 %v487
        %v584 = vunpack.c.l.b16 %v488
        %v585 = vunpack.c.h.b16 %v488
        %v586 = vunpack.c.l.b16 %v489
        %v587 = vunpack.c.h.b16 %v489
        %v588 = vunpack.c.l.b16 %v490
        %v589 = vunpack.c.h.b16 %v490
        %v590 = vunpack.c.l.b16 %v491
        %v591 = vunpack.c.h.b16 %v491
        %v592 = vunpack.c.l.b16 %v492
        %v593 = vunpack.c.h.b16 %v492
        %v594 = vunpack.c.l.b16 %v493
        %v595 = vunpack.c.h.b16 %v493
        %v596 = vpack.c.b16 %v536, %v532
        %v597 = vpack.c.b16 %v537, %v533
        %v598 = vpack.c.b16 %v538, %v534
        %v599 = vpack.c.b16 %v539, %v535
        %v600 = vpack.c.b16 %v544, %v540
        %v601 = vpack.c.b16 %v545, %v541
        %v602 = vpack.c.b16 %v546, %v542
        %v603 = vpack.c.b16 %v547, %v543
        %v604 = vpack.c.b16 %v552, %v548
        %v605 = vpack.c.b16 %v553, %v549
        %v606 = vpack.c.b16 %v554, %v550
        %v607 = vpack.c.b16 %v555, %v551
        %v608 = vpack.c.b16 %v560, %v556
        %v609 = vpack.c.b16 %v561, %v557
        %v610 = vpack.c.b16 %v562, %v558
        %v611 = vpack.c.b16 %v563, %v559
        %v612 = vpack.c.b16 %v568, %v564
        %v613 = vpack.c.b16 %v569, %v565
        %v614 = vpack.c.b16 %v570, %v566
        %v615 = vpack.c.b16 %v571, %v567
        %v616 = vpack.c.b16 %v576, %v572
        %v617 = vpack.c.b16 %v577, %v573
        %v618 = vpack.c.b16 %v578, %v574
        %v619 = vpack.c.b16 %v579, %v575
        %v620 = vpack.c.b16 %v584, %v580
        %v621 = vpack.c.b16 %v585, %v581
        %v622 = vpack.c.b16 %v586, %v582
        %v623 = vpack.c.b16 %v587, %v583
        %v624 = vpack.c.b16 %v592, %v588
        %v625 = vpack.c.b16 %v593, %v589
        %v626 = vpack.c.b16 %v594, %v590
        %v627 = vpack.c.b16 %v595, %v591
        %660 = vmatprep.subr.bf16.mxu0 %v625
        %661 = vmatpush1.bf16.msra.mxu0 %v624
        %662 = vmatprep.subr.bf16.mxu0 %v621
        %663 = vmatpush1.bf16.msra.mxu0 %v620
        %664 = vmatprep.subr.bf16.mxu0 %v617
        %665 = vmatpush1.bf16.msra.mxu0 %v616
        %666 = vmatprep.subr.bf16.mxu0 %v613
        %667 = vmatpush1.bf16.msra.mxu0 %v612
        %668 = vmatprep.subr.bf16.mxu0 %v609
        %669 = vmatpush1.bf16.msra.mxu0 %v608
        %670 = vmatprep.subr.bf16.mxu0 %v605
        %671 = vmatpush1.bf16.msra.mxu0 %v604
        %672 = vmatprep.subr.bf16.mxu0 %v601
        %673 = vmatpush1.bf16.msra.mxu0 %v600
        %674 = vmatprep.subr.bf16.mxu0 %v597
        %675 = vmatpush1.bf16.msra.mxu0 %v596
        %676 = vmatprep.subr.bf16.mxu0 0
        %677 = vmatpush2.bf16.msra.mxu0 0
        %678 = vmatprep.subr.bf16.mxu0 0
        %679 = vmatpush2.bf16.msra.mxu0 0
        %680 = vmatprep.subr.bf16.mxu0 0
        %681 = vmatpush2.bf16.msra.mxu0 0
        %682 = vmatprep.subr.bf16.mxu0 0
        %683 = vmatpush2.bf16.msra.mxu0 0
        %684 = vmatprep.subr.bf16.mxu0 0
        %685 = vmatpush2.bf16.msra.mxu0 0
        %686 = vmatprep.subr.bf16.mxu0 0
        %687 = vmatpush2.bf16.msra.mxu0 0
        %688 = vmatprep.subr.bf16.mxu0 0
        %689 = vmatpush2.bf16.msra.mxu0 0
        %690 = vmatprep.subr.bf16.mxu0 0
        %691 = vmatpush2.bf16.msra.mxu0 0
        %692 = vmatprep.mubr.bf16.mxu0 0
        %693 = vmatmul.mubr.bf16.gmra.mxu0 %v498
        %v694 = vpop.f32.mrf.mxu0
        %v695 = vadd.f32 0.0, %v694
        %v696 = vpop.f32.mrf.mxu0
        %v697 = vadd.f32 0.0, %v696
        %v698 = vpop.f32.mrf.mxu0
        %v699 = vadd.f32 0.0, %v698
        %v700 = vpop.f32.mrf.mxu0
        %v701 = vadd.f32 0.0, %v700
        %702 = vdwg.mxu0
        %703 = vmatprep.subr.bf16.mxu0 %v627
        %704 = vmatpush1.bf16.msra.mxu0 %v626
        %705 = vmatprep.subr.bf16.mxu0 %v623
        %706 = vmatpush1.bf16.msra.mxu0 %v622
        %707 = vmatprep.subr.bf16.mxu0 %v619
        %708 = vmatpush1.bf16.msra.mxu0 %v618
        %709 = vmatprep.subr.bf16.mxu0 %v615
        %710 = vmatpush1.bf16.msra.mxu0 %v614
        %711 = vmatprep.subr.bf16.mxu0 %v611
        %712 = vmatpush1.bf16.msra.mxu0 %v610
        %713 = vmatprep.subr.bf16.mxu0 %v607
        %714 = vmatpush1.bf16.msra.mxu0 %v606
        %715 = vmatprep.subr.bf16.mxu0 %v603
        %716 = vmatpush1.bf16.msra.mxu0 %v602
        %717 = vmatprep.subr.bf16.mxu0 %v599
        %718 = vmatpush1.bf16.msra.mxu0 %v598
        %719 = vmatprep.subr.bf16.mxu0 0
        %720 = vmatpush2.bf16.msra.mxu0 0
        %721 = vmatprep.subr.bf16.mxu0 0
        %722 = vmatpush2.bf16.msra.mxu0 0
        %723 = vmatprep.subr.bf16.mxu0 0
        %724 = vmatpush2.bf16.msra.mxu0 0
        %725 = vmatprep.subr.bf16.mxu0 0
        %726 = vmatpush2.bf16.msra.mxu0 0
        %727 = vmatprep.subr.bf16.mxu0 0
        %728 = vmatpush2.bf16.msra.mxu0 0
        %729 = vmatprep.subr.bf16.mxu0 0
        %730 = vmatpush2.bf16.msra.mxu0 0
        %731 = vmatprep.subr.bf16.mxu0 0
        %732 = vmatpush2.bf16.msra.mxu0 0
        %733 = vmatprep.subr.bf16.mxu0 0
        %734 = vmatpush2.bf16.msra.mxu0 0
        %735 = vmatprep.mubr.bf16.mxu0 0
        %736 = vmatmul.mubr.bf16.gmra.mxu0 %v498
        %v737 = vpop.f32.mrf.mxu0
        %v738 = vadd.f32 0.0, %v737
        %v739 = vpop.f32.mrf.mxu0
        %v740 = vadd.f32 0.0, %v739
        %v741 = vpop.f32.mrf.mxu0
        %v742 = vadd.f32 0.0, %v741
        %v743 = vpop.f32.mrf.mxu0
        %v744 = vadd.f32 0.0, %v743
        %745 = vdwg.mxu0
        %v748 = vunpack.c.l.b16 %v450
        %v749 = vunpack.c.l.b16 %v451
        %v750 = vpack.c.b16 %v749, %v748
        %v759 = vunpack.c.l.b16 %v452
        %v760 = vunpack.c.h.b16 %v452
        %v761 = vunpack.c.l.b16 %v453
        %v762 = vunpack.c.h.b16 %v453
        %v763 = vunpack.c.l.b16 %v454
        %v764 = vunpack.c.h.b16 %v454
        %v765 = vunpack.c.l.b16 %v455
        %v766 = vunpack.c.h.b16 %v455
        %v767 = vunpack.c.l.b16 %v456
        %v768 = vunpack.c.h.b16 %v456
        %v769 = vunpack.c.l.b16 %v457
        %v770 = vunpack.c.h.b16 %v457
        %v771 = vunpack.c.l.b16 %v458
        %v772 = vunpack.c.h.b16 %v458
        %v773 = vunpack.c.l.b16 %v459
        %v774 = vunpack.c.h.b16 %v459
        %v775 = vpack.c.b16 %v763, %v759
        %v776 = vpack.c.b16 %v764, %v760
        %v777 = vpack.c.b16 %v765, %v761
        %v778 = vpack.c.b16 %v766, %v762
        %v779 = vpack.c.b16 %v771, %v767
        %v780 = vpack.c.b16 %v772, %v768
        %v781 = vpack.c.b16 %v773, %v769
        %v782 = vpack.c.b16 %v774, %v770
        %vm791 = vcmask 261120
        %v793 = vsel %vm791, %v750, 0
        %795 = vmatprep.subr.bf16.mxu0 0
        %796 = vmatpush1.bf16.msra.mxu0 0
        %797 = vmatprep.subr.bf16.mxu0 0
        %798 = vmatpush1.bf16.msra.mxu0 0
        %799 = vmatprep.subr.bf16.mxu0 0
        %800 = vmatpush1.bf16.msra.mxu0 0
        %801 = vmatprep.subr.bf16.mxu0 0
        %802 = vmatpush1.bf16.msra.mxu0 0
        %803 = vmatprep.subr.bf16.mxu0 0
        %804 = vmatpush1.bf16.msra.mxu0 0
        %805 = vmatprep.subr.bf16.mxu0 0
        %806 = vmatpush1.bf16.msra.mxu0 0
        %807 = vmatprep.subr.bf16.mxu0 %v780
        %808 = vmatpush1.bf16.msra.mxu0 %v779
        %809 = vmatprep.subr.bf16.mxu0 %v776
        %810 = vmatpush1.bf16.msra.mxu0 %v775
        %811 = vmatprep.subr.bf16.mxu0 0
        %812 = vmatpush2.bf16.msra.mxu0 0
        %813 = vmatprep.subr.bf16.mxu0 0
        %814 = vmatpush2.bf16.msra.mxu0 0
        %815 = vmatprep.subr.bf16.mxu0 0
        %816 = vmatpush2.bf16.msra.mxu0 0
        %817 = vmatprep.subr.bf16.mxu0 0
        %818 = vmatpush2.bf16.msra.mxu0 0
        %819 = vmatprep.subr.bf16.mxu0 0
        %820 = vmatpush2.bf16.msra.mxu0 0
        %821 = vmatprep.subr.bf16.mxu0 0
        %822 = vmatpush2.bf16.msra.mxu0 0
        %823 = vmatprep.subr.bf16.mxu0 0
        %824 = vmatpush2.bf16.msra.mxu0 0
        %825 = vmatprep.subr.bf16.mxu0 0
        %826 = vmatpush2.bf16.msra.mxu0 0
        %827 = vmatprep.mubr.bf16.mxu0 0
        %828 = vmatmul.mubr.bf16.gmra.mxu0 %v793
        %v829 = vpop.f32.mrf.mxu0
        %v830 = vadd.f32 %v695, %v829
        %v831 = vpop.f32.mrf.mxu0
        %v832 = vadd.f32 %v697, %v831
        %v833 = vpop.f32.mrf.mxu0
        %v834 = vadd.f32 %v699, %v833
        %v835 = vpop.f32.mrf.mxu0
        %v836 = vadd.f32 %v701, %v835
        %837 = vdwg.mxu0
        %838 = vmatprep.subr.bf16.mxu0 0
        %839 = vmatpush1.bf16.msra.mxu0 0
        %840 = vmatprep.subr.bf16.mxu0 0
        %841 = vmatpush1.bf16.msra.mxu0 0
        %842 = vmatprep.subr.bf16.mxu0 0
        %843 = vmatpush1.bf16.msra.mxu0 0
        %844 = vmatprep.subr.bf16.mxu0 0
        %845 = vmatpush1.bf16.msra.mxu0 0
        %846 = vmatprep.subr.bf16.mxu0 0
        %847 = vmatpush1.bf16.msra.mxu0 0
        %848 = vmatprep.subr.bf16.mxu0 0
        %849 = vmatpush1.bf16.msra.mxu0 0
        %850 = vmatprep.subr.bf16.mxu0 %v782
        %851 = vmatpush1.bf16.msra.mxu0 %v781
        %852 = vmatprep.subr.bf16.mxu0 %v778
        %853 = vmatpush1.bf16.msra.mxu0 %v777
        %854 = vmatprep.subr.bf16.mxu0 0
        %855 = vmatpush2.bf16.msra.mxu0 0
        %856 = vmatprep.subr.bf16.mxu0 0
        %857 = vmatpush2.bf16.msra.mxu0 0
        %858 = vmatprep.subr.bf16.mxu0 0
        %859 = vmatpush2.bf16.msra.mxu0 0
        %860 = vmatprep.subr.bf16.mxu0 0
        %861 = vmatpush2.bf16.msra.mxu0 0
        %862 = vmatprep.subr.bf16.mxu0 0
        %863 = vmatpush2.bf16.msra.mxu0 0
        %864 = vmatprep.subr.bf16.mxu0 0
        %865 = vmatpush2.bf16.msra.mxu0 0
        %866 = vmatprep.subr.bf16.mxu0 0
        %867 = vmatpush2.bf16.msra.mxu0 0
        %868 = vmatprep.subr.bf16.mxu0 0
        %869 = vmatpush2.bf16.msra.mxu0 0
        %870 = vmatprep.mubr.bf16.mxu0 0
        %871 = vmatmul.mubr.bf16.gmra.mxu0 %v793
        %v872 = vpop.f32.mrf.mxu0
        %v873 = vadd.f32 %v738, %v872
        %v874 = vpop.f32.mrf.mxu0
        %v875 = vadd.f32 %v740, %v874
        %v876 = vpop.f32.mrf.mxu0
        %v877 = vadd.f32 %v742, %v876
        %v878 = vpop.f32.mrf.mxu0
        %v879 = vadd.f32 %v744, %v878
        %880 = vdwg.mxu0
        %v881 = vld [vmem:[%s5] sm:$0xf]
        %v883 = vlaneseq
        %v884 = vshrl.u32 %v883, 7
        %v885 = vsub.s32 0, %v884
        %v886 = vrot.slane %v881, %v885
        %v887 = vlaneseq
        %v888 = vshrl.u32 %v887, 7
        %v889 = vsub.s32 1, %v888
        %v890 = vrot.slane %v881, %v889
        %v891 = vlaneseq
        %v892 = vshrl.u32 %v891, 7
        %v893 = vsub.s32 2, %v892
        %v894 = vrot.slane %v881, %v893
        %v895 = vlaneseq
        %v896 = vshrl.u32 %v895, 7
        %v897 = vsub.s32 3, %v896
        %v898 = vrot.slane %v881, %v897
        %v903 = vadd.f32 %v830, %v886
        %v904 = vadd.f32 %v832, %v890
        %v905 = vadd.f32 %v873, %v894
        %v906 = vadd.f32 %v875, %v898
        %v907 = vadd.f32 %v834, %v886
        %v908 = vadd.f32 %v836, %v890
        %v909 = vadd.f32 %v877, %v894
        %v910 = vadd.f32 %v879, %v898
        %v911 = vmul.f32 %v903, 0.5
        %v912 = vmul.f32 %v907, 0.5
        %v913 = vtanh.pop %v911
        %v914 = vtanh.pop %v912
        %v915 = vmul.f32 %v913, 0.5
        %v916 = vmul.f32 %v914, 0.5
        %v917 = vadd.f32 %v915, 0.5
        %v918 = vadd.f32 %v916, 0.5
        %v919 = vmul.f32 %v904, 0.5
        %v920 = vmul.f32 %v908, 0.5
        %v921 = vtanh.pop %v919
        %v922 = vtanh.pop %v920
        %v923 = vmul.f32 %v921, 0.5
        %v924 = vmul.f32 %v922, 0.5
        %v925 = vadd.f32 %v923, 0.5
        %v926 = vadd.f32 %v924, 0.5
        %v927 = vmul.f32 %v905, 0.5
        %v928 = vmul.f32 %v909, 0.5
        %v929 = vtanh.pop %v927
        %v930 = vtanh.pop %v928
        %v931 = vmul.f32 %v929, 0.5
        %v932 = vmul.f32 %v930, 0.5
        %v933 = vadd.f32 %v931, 0.5
        %v934 = vadd.f32 %v932, 0.5
        %v935 = vtanh.pop %v906
        %v936 = vtanh.pop %v910
        %v937 = vld [vmem:[#allocation3] sm:$0xff]
        %v938 = vld [vmem:[#allocation3 + $0x8] sm:$0xff]
        %v939 = vmul.f32 %v933, %v937
        %v940 = vmul.f32 %v934, %v938
        %v941 = vmul.f32 %v917, %v935
        %v942 = vmul.f32 %v918, %v936
        %v943 = vadd.f32 %v939, %v941
        %v944 = vadd.f32 %v940, %v942
        %v945 = vtanh.pop %v943
        %v946 = vtanh.pop %v944
        %v947 = vmul.f32 %v925, %v945
        %v948 = vmul.f32 %v926, %v946
        %949 = vst [vmem:[#allocation3] sm:$0xff] %v943
        %950 = vst [vmem:[#allocation3 + $0x8] sm:$0xff] %v944
        %v951 = vpack.c.bf16 %v948, %v947
        %v953 = vunpack.c.l.b16 %v951
        %v954 = vunpack.c.h.b16 %v951
        %v955 = vpack.c.b16 %v953, %v953
        %v956 = vpack.c.b16 %v954, %v954
        %959 = vst [vmem:[#allocation2] sm:$0xf] %v955
        %960 = vst [vmem:[#allocation2 + $0x4] sm:$0xf] %v956
        %961 = vst [vmem:[%s424] sm:$0xf] %v955
        %962 = vst [vmem:[%s424 + $0x4] sm:$0xf] %v956
        // Predicated region
        $region69: #{tpu_custom_call.1} parent=43 // pred_check
          %p963 = pneg %p438
        $region70: #{tpu_custom_call.1} parent=43 // pred_check_branch
          %965 = sbr.rel (%p963) target = $region72
        $region71: #{tpu_custom_call.1} parent=43 // pred_region
          %966 = vst [vmem:[%s431] sm:$0xff] %v943
          %967 = vst [vmem:[%s431 + $0x8] sm:$0xff] %v944
        $region72: #{tpu_custom_call.1} parent=43 // pred_fallthru
          _
        %s968 = sand.u32 %s197, 1
        %s969 = scalar_lea.sflag [#allocation6], %s968
        %s970 = sand.u32 %s197, 1
        %s971 = smul.addr %s970, 8
        %s972 = scalar_lea.vmem [#allocation13], %s971
        %s973 = sand.u32 %s223, 1
        %s974 = scalar_lea.sflag [#allocation15], %s973
        %s975 = sand.u32 %s223, 1
        %s976 = smul.addr %s975, 16
        %s977 = scalar_lea.vmem [#allocation14], %s976
        // Predicated region
        $region73: #{tpu_custom_call.1} parent=43 // pred_check
          %p978 = pneg %p207
        $region74: #{tpu_custom_call.1} parent=43 // pred_check_branch
          %980 = sbr.rel (%p978) target = $region76
        $region75: #{tpu_custom_call.1} parent=43 // pred_region
          %s981 = smul.u32 2, %s36
          %s983 = ssub.s32 128, 128
          %984 = vsyncadd %s969, %s983
          %s985 = smul.addr %s37, 4
          %s986 = sadd.s32 %s981, %s985
          %s987 = smul.addr %s986, 64
          %s988 = scalar_lea.hbm %s6, %s987
          %s989 = sshll.u32 %s972, 4
          %s990 = int_to_ptr.vmem [resolvable:$true] %s989
          %995 = dma.vmem_to_hbm [thread:$0]  %s990, 128, %s988, %s969, 64, 64, 4
        $region76: #{tpu_custom_call.1} parent=43 // pred_fallthru
          _
        // Predicated region
        $region77: #{tpu_custom_call.1} parent=43 // pred_check
          %p996 = pneg %p233
        $region78: #{tpu_custom_call.1} parent=43 // pred_check_branch
          %998 = sbr.rel (%p996) target = $region80
        $region79: #{tpu_custom_call.1} parent=43 // pred_region
          %s999 = smul.u32 2, %s36
          %s1001 = ssub.s32 256, 256
          %1002 = vsyncadd %s974, %s1001
          %s1003 = smul.addr %s999, 128
          %s1004 = scalar_lea.hbm %s7, %s1003
          %s1005 = sshll.u32 %s977, 4
          %s1006 = int_to_ptr.vmem [resolvable:$true] %s1005
          %1011 = dma.vmem_to_hbm [thread:$0]  %s1006, 256, %s1004, %s974, 128, 128, 8
        $region80: #{tpu_custom_call.1} parent=43 // pred_fallthru
          _
      $region44: #{tpu_custom_call.1} parent=5 // pred_fallthru
        _
      %p1012 = scmp.le.s32.totalorder 2, %s27
      // Predicated region
      $region81: #{tpu_custom_call.1} parent=5 // pred_check
        %p1013 = pneg %p1012
      $region82: #{tpu_custom_call.1} parent=5 // pred_check_branch
        %1015 = sbr.rel (%p1013) target = $region84
      $region83: #{tpu_custom_call.1} parent=5 // pred_region
        %s1016 = ssub.s32 %s27, 2
        // Predicated region
        $region85: #{tpu_custom_call.1} parent=83 // pred_check
          %p1017 = pneg %p213
        $region86: #{tpu_custom_call.1} parent=83 // pred_check_branch
          %1019 = sbr.rel (%p1017) target = $region88
        $region87: #{tpu_custom_call.1} parent=83 // pred_region
          %s1020 = sand.u32 %s198, 1
          %s1021 = scalar_lea.sflag [#allocation6], %s1020
          %s1022 = sand.u32 %s198, 1
          %s1023 = smul.addr %s1022, 8
          %s1024 = scalar_lea.vmem [#allocation13], %s1023
          %1025 = dma.done %s1021, 128
        $region88: #{tpu_custom_call.1} parent=83 // pred_fallthru
          _
        // Predicated region
        $region89: #{tpu_custom_call.1} parent=83 // pred_check
          %p1026 = pneg %p239
        $region90: #{tpu_custom_call.1} parent=83 // pred_check_branch
          %1028 = sbr.rel (%p1026) target = $region92
        $region91: #{tpu_custom_call.1} parent=83 // pred_region
          %s1029 = sand.u32 %s224, 1
          %s1030 = scalar_lea.sflag [#allocation15], %s1029
          %s1031 = sand.u32 %s224, 1
          %s1032 = smul.addr %s1031, 16
          %s1033 = scalar_lea.vmem [#allocation14], %s1032
          %1034 = dma.done %s1030, 256
        $region92: #{tpu_custom_call.1} parent=83 // pred_fallthru
          _
      $region84: #{tpu_custom_call.1} parent=5 // pred_fallthru
        _
    $region6: #{tpu_custom_call.1} parent=1 // loop_footer
      %s31 = sadd.s32 1, %s27
    $region7: #{tpu_custom_call.1} parent=1 // loop_footer_branch
      %26 = sbr.rel target = $region3
    $region8: #{tpu_custom_call.1} parent=1 // loop_exit
      _
    %1035 = vsyncpa [#allocation5], 1
    %s1036 = scalar_lea.sflag [#allocation5], 1
    %1037 = vsyncpa %s1036, 1
    %1038 = vsyncpa [#allocation8], 1
    %s1039 = scalar_lea.sflag [#allocation8], 1
    %1040 = vsyncpa %s1039, 1
    %1041 = vsyncpa [#allocation11], 1
    %1042 = vsyncpa [#allocation6], 1
    %s1043 = scalar_lea.sflag [#allocation6], 1
    %1044 = vsyncpa %s1043, 1
    %1045 = vsyncpa [#allocation15], 1
    %s1046 = scalar_lea.sflag [#allocation15], 1
    %1047 = vsyncpa %s1046, 1

</llo_original>
